<compile_context>
chip_gen: v7x
topology: tpu7x:2x2x1
jax: 0.10.0
libtpu: 0.0.40
codegen_flags: <defaults>
</compile_context>

<pallas_src>
import math

import jax
import jax.numpy as jnp
import numpy as np
from jax.experimental import pallas as pl
from jax.experimental.pallas import tpu as pltpu


def mab_forward(Q, K, params, num_heads, block_b=None):
    """Q: (B, Nq, dim_Q), K: (B, Nk, dim_K) float32. Returns (B, Nq, dim_V)."""
    B, Nq, dQ = Q.shape
    Bk, Nk, dK = K.shape
    assert Bk == B, "Q and K must share the batch dimension"
    dV = params["wq"].shape[1]
    assert dV % num_heads == 0
    ds = dV // num_heads
    scale = 1.0 / math.sqrt(dV)

    # Choose how many samples to pack per grid step (amortize per-step overhead).
    if block_b is None:
        block_b = 1
        for cand in range(min(B, 16), 0, -1):
            if B % cand == 0:
                block_b = cand
                break
    assert B % block_b == 0
    # Keep sublane tiling friendly: if the block's row count is not a multiple
    # of 8, fall back to the full batch in one step (block == full array dims).
    if block_b != B and ((block_b * Nq) % 8 != 0 or (block_b * Nk) % 8 != 0):
        block_b = B
    n_blocks = B // block_b

    # Flatten batch into the M axis outside the kernel (free in XLA) so the
    # projections / fc_o are single fat 2-D matmuls inside the kernel.
    Q2 = Q.reshape(B * Nq, dQ)
    K2 = K.reshape(B * Nk, dK)

    def kernel(q_ref, k_ref,
               wq_ref, bq_ref, wk_ref, bk_ref, wv_ref, bv_ref,
               wo_ref, bo_ref, o_ref):
        q2 = q_ref[...]                                        # (BB*Nq, dQ)
        k2 = k_ref[...]                                        # (BB*Nk, dK)

        # --- input projections (fat matmuls, M = BB*N) ---
        Qp = jnp.dot(q2, wq_ref[...], preferred_element_type=jnp.float32) + bq_ref[...]
        Kp = jnp.dot(k2, wk_ref[...], preferred_element_type=jnp.float32) + bk_ref[...]
        Vp = jnp.dot(k2, wv_ref[...], preferred_element_type=jnp.float32) + bv_ref[...]

        # lane-index mask machinery for the head split (no lane slicing/concat)
        lane = jax.lax.broadcasted_iota(jnp.int32, (1, dV), 1)

        attn_parts = []
        for b in range(block_b):                               # unrolled, small
            qb = Qp[b * Nq:(b + 1) * Nq, :]                    # (Nq, dV) sublane slice
            kb = Kp[b * Nk:(b + 1) * Nk, :]                    # (Nk, dV)
            vb = Vp[b * Nk:(b + 1) * Nk, :]                    # (Nk, dV)
            acc = jnp.zeros((Nq, dV), jnp.float32)
            for h in range(num_heads):                         # unrolled
                m = ((lane >= h * ds) & (lane < (h + 1) * ds)).astype(jnp.float32)
                # scores restricted to head-h columns via the Q-side mask
                s = jax.lax.dot_general(
                    qb * m, kb, (((1,), (1,)), ((), ())),
                    preferred_element_type=jnp.float32) * scale     # (Nq, Nk)
                s = s - jnp.max(s, axis=-1, keepdims=True)
                e = jnp.exp(s)
                a = e / jnp.sum(e, axis=-1, keepdims=True)
                # V-side mask routes this head's output into its own columns
                acc = acc + jnp.dot(a, vb * m,
                                    preferred_element_type=jnp.float32)
            attn_parts.append(acc)

        attn = attn_parts[0] if block_b == 1 else jnp.concatenate(attn_parts, axis=0)
        O = Qp + attn                                          # (BB*Nq, dV)

        # --- O = O + relu(fc_o(O)) (fat matmul, M = BB*Nq) ---
        ff = jnp.maximum(
            jnp.dot(O, wo_ref[...], preferred_element_type=jnp.float32) + bo_ref[...],
            0.0)
        o_ref[...] = O + ff

    def const2(shape):
        return pl.BlockSpec(shape, lambda i: (0, 0))

    grid_spec = pltpu.PrefetchScalarGridSpec(
        num_scalar_prefetch=0,
        grid=(n_blocks,),
        in_specs=[
            pl.BlockSpec((block_b * Nq, dQ), lambda i: (i, 0)),   # Q (flattened)
            pl.BlockSpec((block_b * Nk, dK), lambda i: (i, 0)),   # K (flattened)
            const2((dQ, dV)), const2((1, dV)),                    # fc_q
            const2((dK, dV)), const2((1, dV)),                    # fc_k
            const2((dK, dV)), const2((1, dV)),                    # fc_v
            const2((dV, dV)), const2((1, dV)),                    # fc_o
        ],
        out_specs=pl.BlockSpec((block_b * Nq, dV), lambda i: (i, 0)),
    )

    out = pl.pallas_call(
        kernel,
        out_shape=jax.ShapeDtypeStruct((B * Nq, dV), jnp.float32),
        grid_spec=grid_spec,
        compiler_params=pltpu.CompilerParams(
            dimension_semantics=("parallel",)),
    )(Q2, K2,
      params["wq"], params["bq"], params["wk"], params["bk"],
      params["wv"], params["bv"], params["wo"], params["bo"])

    return out.reshape(B, Nq, dV)


# ----------------------------- parameter setup -----------------------------

def make_params(key, dim_Q, dim_K, dim_V):
    ks = jax.random.split(key, 8)

    def lin(kw, kb, fan_in, fan_out):
        w = jax.random.normal(kw, (fan_in, fan_out), jnp.float32) / np.sqrt(fan_in)
        b = 0.1 * jax.random.normal(kb, (1, fan_out), jnp.float32)
        return w, b

    wq, bq = lin(ks[0], ks[1], dim_Q, dim_V)
    wk, bk = lin(ks[2], ks[3], dim_K, dim_V)
    wv, bv = lin(ks[4], ks[5], dim_K, dim_V)
    wo, bo = lin(ks[6], ks[7], dim_V, dim_V)
    return dict(wq=wq, bq=bq, wk=wk, bk=bk, wv=wv, bv=bv, wo=wo, bo=bo)


# --------------------------- pure-JAX reference ----------------------------

def reference_mab(Q, K, params, num_heads):
    """Literal translation of the PyTorch MAB.forward (ln=False)."""
    dV = params["wq"].shape[1]
    Qp = jnp.einsum("bnd,dv->bnv", Q, params["wq"]) + params["bq"]
    Kp = jnp.einsum("bnd,dv->bnv", K, params["wk"]) + params["bk"]
    Vp = jnp.einsum("bnd,dv->bnv", K, params["wv"]) + params["bv"]

    def split_cat(X):   # torch.cat(X.split(dim_split, 2), 0)
        return jnp.concatenate(jnp.split(X, num_heads, axis=2), axis=0)

    Q_, K_, V_ = split_cat(Qp), split_cat(Kp), split_cat(Vp)
    A = jax.nn.softmax(
        jnp.einsum("bqd,bkd->bqk", Q_, K_) / np.sqrt(dV), axis=2)
    O_ = Q_ + jnp.einsum("bqk,bkd->bqd", A, V_)
    O = jnp.concatenate(jnp.split(O_, num_heads, axis=0), axis=2)   # (B, Nq, dV)
    O = O + jax.nn.relu(jnp.einsum("bnd,dv->bnv", O, params["wo"]) + params["bo"])
    return O


if __name__ == "__main__":
    B, Nq, Nk = 2, 8, 16
    dim_Q, dim_K, dim_V, num_heads = 16, 16, 32, 4

    key = jax.random.PRNGKey(0)
    kq, kk, kp = jax.random.split(key, 3)
    Q = jax.random.normal(kq, (B, Nq, dim_Q), jnp.float32)
    K = jax.random.normal(kk, (B, Nk, dim_K), jnp.float32)
    params = make_params(kp, dim_Q, dim_K, dim_V)

    out = jax.block_until_ready(mab_forward(Q, K, params, num_heads))
    ref = jax.block_until_ready(reference_mab(Q, K, params, num_heads))

    assert out.shape == (B, Nq, dim_V), out.shape
    np.testing.assert_allclose(np.asarray(out), np.asarray(ref),
                               rtol=2e-3, atol=2e-3)
    print("KERNEL_OK")
</pallas_src>

<mosaic_0001>
module attributes {stable_mosaic.version = 11 : i64} {
  func.func @kernel(%arg0: i32, %arg1: memref<16x16xf32, #tpu.memory_space<vmem>>, %arg2: memref<32x16xf32, #tpu.memory_space<vmem>>, %arg3: memref<16x32xf32, #tpu.memory_space<vmem>>, %arg4: memref<1x32xf32, #tpu.memory_space<vmem>>, %arg5: memref<16x32xf32, #tpu.memory_space<vmem>>, %arg6: memref<1x32xf32, #tpu.memory_space<vmem>>, %arg7: memref<16x32xf32, #tpu.memory_space<vmem>>, %arg8: memref<1x32xf32, #tpu.memory_space<vmem>>, %arg9: memref<32x32xf32, #tpu.memory_space<vmem>>, %arg10: memref<1x32xf32, #tpu.memory_space<vmem>>, %arg11: memref<16x32xf32, #tpu.memory_space<vmem>>) attributes {dimension_semantics = [#tpu.dimension_semantics<parallel>], iteration_bounds = array<i64: 1>, scalar_prefetch = 0 : i64, scratch_operands = 0 : i64, tpu.core_type = #tpu.core_type<tc>, window_params = [{transform_indices = @transform_0, window_bounds = array<i64: 16, 16>}, {transform_indices = @transform_1, window_bounds = array<i64: 32, 16>}, {pipeline_mode = #tpu.pipeline_mode<synchronous>, transform_indices = @transform_2, window_bounds = array<i64: 16, 32>}, {pipeline_mode = #tpu.pipeline_mode<synchronous>, transform_indices = @transform_3, window_bounds = array<i64: 1, 32>}, {pipeline_mode = #tpu.pipeline_mode<synchronous>, transform_indices = @transform_4, window_bounds = array<i64: 16, 32>}, {pipeline_mode = #tpu.pipeline_mode<synchronous>, transform_indices = @transform_5, window_bounds = array<i64: 1, 32>}, {pipeline_mode = #tpu.pipeline_mode<synchronous>, transform_indices = @transform_6, window_bounds = array<i64: 16, 32>}, {pipeline_mode = #tpu.pipeline_mode<synchronous>, transform_indices = @transform_7, window_bounds = array<i64: 1, 32>}, {pipeline_mode = #tpu.pipeline_mode<synchronous>, transform_indices = @transform_8, window_bounds = array<i64: 32, 32>}, {pipeline_mode = #tpu.pipeline_mode<synchronous>, transform_indices = @transform_9, window_bounds = array<i64: 1, 32>}, {transform_indices = @transform_10, window_bounds = array<i64: 16, 32>}]} {
    %c0 = arith.constant 0 : index
    %c0_0 = arith.constant 0 : index
    %0 = vector.load %arg1[%c0, %c0_0] : memref<16x16xf32, #tpu.memory_space<vmem>>, vector<16x16xf32>
    %c0_1 = arith.constant 0 : index
    %c0_2 = arith.constant 0 : index
    %1 = vector.load %arg2[%c0_1, %c0_2] : memref<32x16xf32, #tpu.memory_space<vmem>>, vector<32x16xf32>
    %c0_3 = arith.constant 0 : index
    %c0_4 = arith.constant 0 : index
    %2 = vector.load %arg3[%c0_3, %c0_4] : memref<16x32xf32, #tpu.memory_space<vmem>>, vector<16x32xf32>
    %cst = arith.constant dense<0.000000e+00> : vector<16x32xf32>
    %3 = tpu.matmul %0, %2, %cst {dimension_numbers = #tpu.dot_dimension_numbers<[1], [0], [0], [1], [0, 0, 1, 1], [], []>} : vector<16x16xf32>, vector<16x32xf32>, vector<16x32xf32> -> vector<16x32xf32>
    %c0_5 = arith.constant 0 : index
    %c0_6 = arith.constant 0 : index
    %4 = vector.load %arg4[%c0_5, %c0_6] : memref<1x32xf32, #tpu.memory_space<vmem>>, vector<1x32xf32>
    %5 = vector.broadcast %4 : vector<1x32xf32> to vector<16x32xf32>
    %6 = arith.addf %3, %5 : vector<16x32xf32>
    %c0_7 = arith.constant 0 : index
    %c0_8 = arith.constant 0 : index
    %7 = vector.load %arg5[%c0_7, %c0_8] : memref<16x32xf32, #tpu.memory_space<vmem>>, vector<16x32xf32>
    %cst_9 = arith.constant dense<0.000000e+00> : vector<32x32xf32>
    %8 = tpu.matmul %1, %7, %cst_9 {dimension_numbers = #tpu.dot_dimension_numbers<[1], [0], [0], [1], [0, 0, 1, 1], [], []>} : vector<32x16xf32>, vector<16x32xf32>, vector<32x32xf32> -> vector<32x32xf32>
    %c0_10 = arith.constant 0 : index
    %c0_11 = arith.constant 0 : index
    %9 = vector.load %arg6[%c0_10, %c0_11] : memref<1x32xf32, #tpu.memory_space<vmem>>, vector<1x32xf32>
    %10 = vector.broadcast %9 : vector<1x32xf32> to vector<32x32xf32>
    %11 = arith.addf %8, %10 : vector<32x32xf32>
    %c0_12 = arith.constant 0 : index
    %c0_13 = arith.constant 0 : index
    %12 = vector.load %arg7[%c0_12, %c0_13] : memref<16x32xf32, #tpu.memory_space<vmem>>, vector<16x32xf32>
    %cst_14 = arith.constant dense<0.000000e+00> : vector<32x32xf32>
    %13 = tpu.matmul %1, %12, %cst_14 {dimension_numbers = #tpu.dot_dimension_numbers<[1], [0], [0], [1], [0, 0, 1, 1], [], []>} : vector<32x16xf32>, vector<16x32xf32>, vector<32x32xf32> -> vector<32x32xf32>
    %c0_15 = arith.constant 0 : index
    %c0_16 = arith.constant 0 : index
    %14 = vector.load %arg8[%c0_15, %c0_16] : memref<1x32xf32, #tpu.memory_space<vmem>>, vector<1x32xf32>
    %15 = vector.broadcast %14 : vector<1x32xf32> to vector<32x32xf32>
    %16 = arith.addf %13, %15 : vector<32x32xf32>
    %17 = tpu.iota {dimensions = array<i32: 1>} : vector<1x32xi32>
    %18 = vector.extract_strided_slice %6 {offsets = [0, 0], sizes = [8, 32], strides = [1, 1]} : vector<16x32xf32> to vector<8x32xf32>
    %19 = vector.extract_strided_slice %11 {offsets = [0, 0], sizes = [16, 32], strides = [1, 1]} : vector<32x32xf32> to vector<16x32xf32>
    %20 = vector.extract_strided_slice %16 {offsets = [0, 0], sizes = [16, 32], strides = [1, 1]} : vector<32x32xf32> to vector<16x32xf32>
    %cst_17 = arith.constant 0.000000e+00 : f32
    %21 = vector.broadcast %cst_17 : f32 to vector<8x32xf32>
    %c0_i32 = arith.constant 0 : i32
    %22 = vector.broadcast %c0_i32 : i32 to vector<1x32xi32>
    %23 = arith.cmpi sge, %17, %22 : vector<1x32xi32>
    %c8_i32 = arith.constant 8 : i32
    %24 = vector.broadcast %c8_i32 : i32 to vector<1x32xi32>
    %25 = arith.cmpi slt, %17, %24 : vector<1x32xi32>
    %26 = arith.andi %23, %25 : vector<1x32xi1>
    %27 = arith.extui %26 : vector<1x32xi1> to vector<1x32xi32>
    %28 = arith.sitofp %27 : vector<1x32xi32> to vector<1x32xf32>
    %29 = vector.broadcast %28 : vector<1x32xf32> to vector<8x32xf32>
    %30 = arith.mulf %18, %29 : vector<8x32xf32>
    %cst_18 = arith.constant dense<0.000000e+00> : vector<8x16xf32>
    %31 = tpu.matmul %30, %19, %cst_18 {dimension_numbers = #tpu.dot_dimension_numbers<[1], [1], [0], [0], [0, 0, 1, 0], [], []>} : vector<8x32xf32>, vector<16x32xf32>, vector<8x16xf32> -> vector<8x16xf32>
    %cst_19 = arith.constant 0.176776692 : f32
    %32 = vector.broadcast %cst_19 : f32 to vector<8x16xf32>
    %33 = arith.mulf %31, %32 : vector<8x16xf32>
    %cst_20 = arith.constant dense<0xFF800000> : vector<8xf32>
    %34 = vector.multi_reduction <maximumf>, %33, %cst_20 [1] : vector<8x16xf32> to vector<8xf32>
    %35 = vector.shape_cast %34 : vector<8xf32> to vector<8x1xf32>
    %36 = vector.broadcast %35 : vector<8x1xf32> to vector<8x16xf32>
    %37 = arith.subf %33, %36 : vector<8x16xf32>
    %38 = math.exp %37 : vector<8x16xf32>
    %cst_21 = arith.constant dense<0.000000e+00> : vector<8xf32>
    %39 = vector.multi_reduction <add>, %38, %cst_21 [1] : vector<8x16xf32> to vector<8xf32>
    %40 = vector.shape_cast %39 : vector<8xf32> to vector<8x1xf32>
    %41 = vector.broadcast %40 : vector<8x1xf32> to vector<8x16xf32>
    %42 = arith.divf %38, %41 : vector<8x16xf32>
    %43 = vector.broadcast %28 : vector<1x32xf32> to vector<16x32xf32>
    %44 = arith.mulf %20, %43 : vector<16x32xf32>
    %cst_22 = arith.constant dense<0.000000e+00> : vector<8x32xf32>
    %45 = tpu.matmul %42, %44, %cst_22 {dimension_numbers = #tpu.dot_dimension_numbers<[1], [0], [0], [1], [0, 0, 1, 1], [], []>} : vector<8x16xf32>, vector<16x32xf32>, vector<8x32xf32> -> vector<8x32xf32>
    %46 = arith.addf %21, %45 : vector<8x32xf32>
    %c8_i32_23 = arith.constant 8 : i32
    %47 = vector.broadcast %c8_i32_23 : i32 to vector<1x32xi32>
    %48 = arith.cmpi sge, %17, %47 : vector<1x32xi32>
    %c16_i32 = arith.constant 16 : i32
    %49 = vector.broadcast %c16_i32 : i32 to vector<1x32xi32>
    %50 = arith.cmpi slt, %17, %49 : vector<1x32xi32>
    %51 = arith.andi %48, %50 : vector<1x32xi1>
    %52 = arith.extui %51 : vector<1x32xi1> to vector<1x32xi32>
    %53 = arith.sitofp %52 : vector<1x32xi32> to vector<1x32xf32>
    %54 = vector.broadcast %53 : vector<1x32xf32> to vector<8x32xf32>
    %55 = arith.mulf %18, %54 : vector<8x32xf32>
    %cst_24 = arith.constant dense<0.000000e+00> : vector<8x16xf32>
    %56 = tpu.matmul %55, %19, %cst_24 {dimension_numbers = #tpu.dot_dimension_numbers<[1], [1], [0], [0], [0, 0, 1, 0], [], []>} : vector<8x32xf32>, vector<16x32xf32>, vector<8x16xf32> -> vector<8x16xf32>
    %cst_25 = arith.constant 0.176776692 : f32
    %57 = vector.broadcast %cst_25 : f32 to vector<8x16xf32>
    %58 = arith.mulf %56, %57 : vector<8x16xf32>
    %cst_26 = arith.constant dense<0xFF800000> : vector<8xf32>
    %59 = vector.multi_reduction <maximumf>, %58, %cst_26 [1] : vector<8x16xf32> to vector<8xf32>
    %60 = vector.shape_cast %59 : vector<8xf32> to vector<8x1xf32>
    %61 = vector.broadcast %60 : vector<8x1xf32> to vector<8x16xf32>
    %62 = arith.subf %58, %61 : vector<8x16xf32>
    %63 = math.exp %62 : vector<8x16xf32>
    %cst_27 = arith.constant dense<0.000000e+00> : vector<8xf32>
    %64 = vector.multi_reduction <add>, %63, %cst_27 [1] : vector<8x16xf32> to vector<8xf32>
    %65 = vector.shape_cast %64 : vector<8xf32> to vector<8x1xf32>
    %66 = vector.broadcast %65 : vector<8x1xf32> to vector<8x16xf32>
    %67 = arith.divf %63, %66 : vector<8x16xf32>
    %68 = vector.broadcast %53 : vector<1x32xf32> to vector<16x32xf32>
    %69 = arith.mulf %20, %68 : vector<16x32xf32>
    %cst_28 = arith.constant dense<0.000000e+00> : vector<8x32xf32>
    %70 = tpu.matmul %67, %69, %cst_28 {dimension_numbers = #tpu.dot_dimension_numbers<[1], [0], [0], [1], [0, 0, 1, 1], [], []>} : vector<8x16xf32>, vector<16x32xf32>, vector<8x32xf32> -> vector<8x32xf32>
    %71 = arith.addf %46, %70 : vector<8x32xf32>
    %c16_i32_29 = arith.constant 16 : i32
    %72 = vector.broadcast %c16_i32_29 : i32 to vector<1x32xi32>
    %73 = arith.cmpi sge, %17, %72 : vector<1x32xi32>
    %c24_i32 = arith.constant 24 : i32
    %74 = vector.broadcast %c24_i32 : i32 to vector<1x32xi32>
    %75 = arith.cmpi slt, %17, %74 : vector<1x32xi32>
    %76 = arith.andi %73, %75 : vector<1x32xi1>
    %77 = arith.extui %76 : vector<1x32xi1> to vector<1x32xi32>
    %78 = arith.sitofp %77 : vector<1x32xi32> to vector<1x32xf32>
    %79 = vector.broadcast %78 : vector<1x32xf32> to vector<8x32xf32>
    %80 = arith.mulf %18, %79 : vector<8x32xf32>
    %cst_30 = arith.constant dense<0.000000e+00> : vector<8x16xf32>
    %81 = tpu.matmul %80, %19, %cst_30 {dimension_numbers = #tpu.dot_dimension_numbers<[1], [1], [0], [0], [0, 0, 1, 0], [], []>} : vector<8x32xf32>, vector<16x32xf32>, vector<8x16xf32> -> vector<8x16xf32>
    %cst_31 = arith.constant 0.176776692 : f32
    %82 = vector.broadcast %cst_31 : f32 to vector<8x16xf32>
    %83 = arith.mulf %81, %82 : vector<8x16xf32>
    %cst_32 = arith.constant dense<0xFF800000> : vector<8xf32>
    %84 = vector.multi_reduction <maximumf>, %83, %cst_32 [1] : vector<8x16xf32> to vector<8xf32>
    %85 = vector.shape_cast %84 : vector<8xf32> to vector<8x1xf32>
    %86 = vector.broadcast %85 : vector<8x1xf32> to vector<8x16xf32>
    %87 = arith.subf %83, %86 : vector<8x16xf32>
    %88 = math.exp %87 : vector<8x16xf32>
    %cst_33 = arith.constant dense<0.000000e+00> : vector<8xf32>
    %89 = vector.multi_reduction <add>, %88, %cst_33 [1] : vector<8x16xf32> to vector<8xf32>
    %90 = vector.shape_cast %89 : vector<8xf32> to vector<8x1xf32>
    %91 = vector.broadcast %90 : vector<8x1xf32> to vector<8x16xf32>
    %92 = arith.divf %88, %91 : vector<8x16xf32>
    %93 = vector.broadcast %78 : vector<1x32xf32> to vector<16x32xf32>
    %94 = arith.mulf %20, %93 : vector<16x32xf32>
    %cst_34 = arith.constant dense<0.000000e+00> : vector<8x32xf32>
    %95 = tpu.matmul %92, %94, %cst_34 {dimension_numbers = #tpu.dot_dimension_numbers<[1], [0], [0], [1], [0, 0, 1, 1], [], []>} : vector<8x16xf32>, vector<16x32xf32>, vector<8x32xf32> -> vector<8x32xf32>
    %96 = arith.addf %71, %95 : vector<8x32xf32>
    %c24_i32_35 = arith.constant 24 : i32
    %97 = vector.broadcast %c24_i32_35 : i32 to vector<1x32xi32>
    %98 = arith.cmpi sge, %17, %97 : vector<1x32xi32>
    %c32_i32 = arith.constant 32 : i32
    %99 = vector.broadcast %c32_i32 : i32 to vector<1x32xi32>
    %100 = arith.cmpi slt, %17, %99 : vector<1x32xi32>
    %101 = arith.andi %98, %100 : vector<1x32xi1>
    %102 = arith.extui %101 : vector<1x32xi1> to vector<1x32xi32>
    %103 = arith.sitofp %102 : vector<1x32xi32> to vector<1x32xf32>
    %104 = vector.broadcast %103 : vector<1x32xf32> to vector<8x32xf32>
    %105 = arith.mulf %18, %104 : vector<8x32xf32>
    %cst_36 = arith.constant dense<0.000000e+00> : vector<8x16xf32>
    %106 = tpu.matmul %105, %19, %cst_36 {dimension_numbers = #tpu.dot_dimension_numbers<[1], [1], [0], [0], [0, 0, 1, 0], [], []>} : vector<8x32xf32>, vector<16x32xf32>, vector<8x16xf32> -> vector<8x16xf32>
    %cst_37 = arith.constant 0.176776692 : f32
    %107 = vector.broadcast %cst_37 : f32 to vector<8x16xf32>
    %108 = arith.mulf %106, %107 : vector<8x16xf32>
    %cst_38 = arith.constant dense<0xFF800000> : vector<8xf32>
    %109 = vector.multi_reduction <maximumf>, %108, %cst_38 [1] : vector<8x16xf32> to vector<8xf32>
    %110 = vector.shape_cast %109 : vector<8xf32> to vector<8x1xf32>
    %111 = vector.broadcast %110 : vector<8x1xf32> to vector<8x16xf32>
    %112 = arith.subf %108, %111 : vector<8x16xf32>
    %113 = math.exp %112 : vector<8x16xf32>
    %cst_39 = arith.constant dense<0.000000e+00> : vector<8xf32>
    %114 = vector.multi_reduction <add>, %113, %cst_39 [1] : vector<8x16xf32> to vector<8xf32>
    %115 = vector.shape_cast %114 : vector<8xf32> to vector<8x1xf32>
    %116 = vector.broadcast %115 : vector<8x1xf32> to vector<8x16xf32>
    %117 = arith.divf %113, %116 : vector<8x16xf32>
    %118 = vector.broadcast %103 : vector<1x32xf32> to vector<16x32xf32>
    %119 = arith.mulf %20, %118 : vector<16x32xf32>
    %cst_40 = arith.constant dense<0.000000e+00> : vector<8x32xf32>
    %120 = tpu.matmul %117, %119, %cst_40 {dimension_numbers = #tpu.dot_dimension_numbers<[1], [0], [0], [1], [0, 0, 1, 1], [], []>} : vector<8x16xf32>, vector<16x32xf32>, vector<8x32xf32> -> vector<8x32xf32>
    %121 = arith.addf %96, %120 : vector<8x32xf32>
    %122 = vector.extract_strided_slice %6 {offsets = [8, 0], sizes = [8, 32], strides = [1, 1]} : vector<16x32xf32> to vector<8x32xf32>
    %123 = vector.extract_strided_slice %11 {offsets = [16, 0], sizes = [16, 32], strides = [1, 1]} : vector<32x32xf32> to vector<16x32xf32>
    %124 = vector.extract_strided_slice %16 {offsets = [16, 0], sizes = [16, 32], strides = [1, 1]} : vector<32x32xf32> to vector<16x32xf32>
    %cst_41 = arith.constant 0.000000e+00 : f32
    %125 = vector.broadcast %cst_41 : f32 to vector<8x32xf32>
    %c0_i32_42 = arith.constant 0 : i32
    %126 = vector.broadcast %c0_i32_42 : i32 to vector<1x32xi32>
    %127 = arith.cmpi sge, %17, %126 : vector<1x32xi32>
    %c8_i32_43 = arith.constant 8 : i32
    %128 = vector.broadcast %c8_i32_43 : i32 to vector<1x32xi32>
    %129 = arith.cmpi slt, %17, %128 : vector<1x32xi32>
    %130 = arith.andi %127, %129 : vector<1x32xi1>
    %131 = arith.extui %130 : vector<1x32xi1> to vector<1x32xi32>
    %132 = arith.sitofp %131 : vector<1x32xi32> to vector<1x32xf32>
    %133 = vector.broadcast %132 : vector<1x32xf32> to vector<8x32xf32>
    %134 = arith.mulf %122, %133 : vector<8x32xf32>
    %cst_44 = arith.constant dense<0.000000e+00> : vector<8x16xf32>
    %135 = tpu.matmul %134, %123, %cst_44 {dimension_numbers = #tpu.dot_dimension_numbers<[1], [1], [0], [0], [0, 0, 1, 0], [], []>} : vector<8x32xf32>, vector<16x32xf32>, vector<8x16xf32> -> vector<8x16xf32>
    %cst_45 = arith.constant 0.176776692 : f32
    %136 = vector.broadcast %cst_45 : f32 to vector<8x16xf32>
    %137 = arith.mulf %135, %136 : vector<8x16xf32>
    %cst_46 = arith.constant dense<0xFF800000> : vector<8xf32>
    %138 = vector.multi_reduction <maximumf>, %137, %cst_46 [1] : vector<8x16xf32> to vector<8xf32>
    %139 = vector.shape_cast %138 : vector<8xf32> to vector<8x1xf32>
    %140 = vector.broadcast %139 : vector<8x1xf32> to vector<8x16xf32>
    %141 = arith.subf %137, %140 : vector<8x16xf32>
    %142 = math.exp %141 : vector<8x16xf32>
    %cst_47 = arith.constant dense<0.000000e+00> : vector<8xf32>
    %143 = vector.multi_reduction <add>, %142, %cst_47 [1] : vector<8x16xf32> to vector<8xf32>
    %144 = vector.shape_cast %143 : vector<8xf32> to vector<8x1xf32>
    %145 = vector.broadcast %144 : vector<8x1xf32> to vector<8x16xf32>
    %146 = arith.divf %142, %145 : vector<8x16xf32>
    %147 = vector.broadcast %132 : vector<1x32xf32> to vector<16x32xf32>
    %148 = arith.mulf %124, %147 : vector<16x32xf32>
    %cst_48 = arith.constant dense<0.000000e+00> : vector<8x32xf32>
    %149 = tpu.matmul %146, %148, %cst_48 {dimension_numbers = #tpu.dot_dimension_numbers<[1], [0], [0], [1], [0, 0, 1, 1], [], []>} : vector<8x16xf32>, vector<16x32xf32>, vector<8x32xf32> -> vector<8x32xf32>
    %150 = arith.addf %125, %149 : vector<8x32xf32>
    %c8_i32_49 = arith.constant 8 : i32
    %151 = vector.broadcast %c8_i32_49 : i32 to vector<1x32xi32>
    %152 = arith.cmpi sge, %17, %151 : vector<1x32xi32>
    %c16_i32_50 = arith.constant 16 : i32
    %153 = vector.broadcast %c16_i32_50 : i32 to vector<1x32xi32>
    %154 = arith.cmpi slt, %17, %153 : vector<1x32xi32>
    %155 = arith.andi %152, %154 : vector<1x32xi1>
    %156 = arith.extui %155 : vector<1x32xi1> to vector<1x32xi32>
    %157 = arith.sitofp %156 : vector<1x32xi32> to vector<1x32xf32>
    %158 = vector.broadcast %157 : vector<1x32xf32> to vector<8x32xf32>
    %159 = arith.mulf %122, %158 : vector<8x32xf32>
    %cst_51 = arith.constant dense<0.000000e+00> : vector<8x16xf32>
    %160 = tpu.matmul %159, %123, %cst_51 {dimension_numbers = #tpu.dot_dimension_numbers<[1], [1], [0], [0], [0, 0, 1, 0], [], []>} : vector<8x32xf32>, vector<16x32xf32>, vector<8x16xf32> -> vector<8x16xf32>
    %cst_52 = arith.constant 0.176776692 : f32
    %161 = vector.broadcast %cst_52 : f32 to vector<8x16xf32>
    %162 = arith.mulf %160, %161 : vector<8x16xf32>
    %cst_53 = arith.constant dense<0xFF800000> : vector<8xf32>
    %163 = vector.multi_reduction <maximumf>, %162, %cst_53 [1] : vector<8x16xf32> to vector<8xf32>
    %164 = vector.shape_cast %163 : vector<8xf32> to vector<8x1xf32>
    %165 = vector.broadcast %164 : vector<8x1xf32> to vector<8x16xf32>
    %166 = arith.subf %162, %165 : vector<8x16xf32>
    %167 = math.exp %166 : vector<8x16xf32>
    %cst_54 = arith.constant dense<0.000000e+00> : vector<8xf32>
    %168 = vector.multi_reduction <add>, %167, %cst_54 [1] : vector<8x16xf32> to vector<8xf32>
    %169 = vector.shape_cast %168 : vector<8xf32> to vector<8x1xf32>
    %170 = vector.broadcast %169 : vector<8x1xf32> to vector<8x16xf32>
    %171 = arith.divf %167, %170 : vector<8x16xf32>
    %172 = vector.broadcast %157 : vector<1x32xf32> to vector<16x32xf32>
    %173 = arith.mulf %124, %172 : vector<16x32xf32>
    %cst_55 = arith.constant dense<0.000000e+00> : vector<8x32xf32>
    %174 = tpu.matmul %171, %173, %cst_55 {dimension_numbers = #tpu.dot_dimension_numbers<[1], [0], [0], [1], [0, 0, 1, 1], [], []>} : vector<8x16xf32>, vector<16x32xf32>, vector<8x32xf32> -> vector<8x32xf32>
    %175 = arith.addf %150, %174 : vector<8x32xf32>
    %c16_i32_56 = arith.constant 16 : i32
    %176 = vector.broadcast %c16_i32_56 : i32 to vector<1x32xi32>
    %177 = arith.cmpi sge, %17, %176 : vector<1x32xi32>
    %c24_i32_57 = arith.constant 24 : i32
    %178 = vector.broadcast %c24_i32_57 : i32 to vector<1x32xi32>
    %179 = arith.cmpi slt, %17, %178 : vector<1x32xi32>
    %180 = arith.andi %177, %179 : vector<1x32xi1>
    %181 = arith.extui %180 : vector<1x32xi1> to vector<1x32xi32>
    %182 = arith.sitofp %181 : vector<1x32xi32> to vector<1x32xf32>
    %183 = vector.broadcast %182 : vector<1x32xf32> to vector<8x32xf32>
    %184 = arith.mulf %122, %183 : vector<8x32xf32>
    %cst_58 = arith.constant dense<0.000000e+00> : vector<8x16xf32>
    %185 = tpu.matmul %184, %123, %cst_58 {dimension_numbers = #tpu.dot_dimension_numbers<[1], [1], [0], [0], [0, 0, 1, 0], [], []>} : vector<8x32xf32>, vector<16x32xf32>, vector<8x16xf32> -> vector<8x16xf32>
    %cst_59 = arith.constant 0.176776692 : f32
    %186 = vector.broadcast %cst_59 : f32 to vector<8x16xf32>
    %187 = arith.mulf %185, %186 : vector<8x16xf32>
    %cst_60 = arith.constant dense<0xFF800000> : vector<8xf32>
    %188 = vector.multi_reduction <maximumf>, %187, %cst_60 [1] : vector<8x16xf32> to vector<8xf32>
    %189 = vector.shape_cast %188 : vector<8xf32> to vector<8x1xf32>
    %190 = vector.broadcast %189 : vector<8x1xf32> to vector<8x16xf32>
    %191 = arith.subf %187, %190 : vector<8x16xf32>
    %192 = math.exp %191 : vector<8x16xf32>
    %cst_61 = arith.constant dense<0.000000e+00> : vector<8xf32>
    %193 = vector.multi_reduction <add>, %192, %cst_61 [1] : vector<8x16xf32> to vector<8xf32>
    %194 = vector.shape_cast %193 : vector<8xf32> to vector<8x1xf32>
    %195 = vector.broadcast %194 : vector<8x1xf32> to vector<8x16xf32>
    %196 = arith.divf %192, %195 : vector<8x16xf32>
    %197 = vector.broadcast %182 : vector<1x32xf32> to vector<16x32xf32>
    %198 = arith.mulf %124, %197 : vector<16x32xf32>
    %cst_62 = arith.constant dense<0.000000e+00> : vector<8x32xf32>
    %199 = tpu.matmul %196, %198, %cst_62 {dimension_numbers = #tpu.dot_dimension_numbers<[1], [0], [0], [1], [0, 0, 1, 1], [], []>} : vector<8x16xf32>, vector<16x32xf32>, vector<8x32xf32> -> vector<8x32xf32>
    %200 = arith.addf %175, %199 : vector<8x32xf32>
    %c24_i32_63 = arith.constant 24 : i32
    %201 = vector.broadcast %c24_i32_63 : i32 to vector<1x32xi32>
    %202 = arith.cmpi sge, %17, %201 : vector<1x32xi32>
    %c32_i32_64 = arith.constant 32 : i32
    %203 = vector.broadcast %c32_i32_64 : i32 to vector<1x32xi32>
    %204 = arith.cmpi slt, %17, %203 : vector<1x32xi32>
    %205 = arith.andi %202, %204 : vector<1x32xi1>
    %206 = arith.extui %205 : vector<1x32xi1> to vector<1x32xi32>
    %207 = arith.sitofp %206 : vector<1x32xi32> to vector<1x32xf32>
    %208 = vector.broadcast %207 : vector<1x32xf32> to vector<8x32xf32>
    %209 = arith.mulf %122, %208 : vector<8x32xf32>
    %cst_65 = arith.constant dense<0.000000e+00> : vector<8x16xf32>
    %210 = tpu.matmul %209, %123, %cst_65 {dimension_numbers = #tpu.dot_dimension_numbers<[1], [1], [0], [0], [0, 0, 1, 0], [], []>} : vector<8x32xf32>, vector<16x32xf32>, vector<8x16xf32> -> vector<8x16xf32>
    %cst_66 = arith.constant 0.176776692 : f32
    %211 = vector.broadcast %cst_66 : f32 to vector<8x16xf32>
    %212 = arith.mulf %210, %211 : vector<8x16xf32>
    %cst_67 = arith.constant dense<0xFF800000> : vector<8xf32>
    %213 = vector.multi_reduction <maximumf>, %212, %cst_67 [1] : vector<8x16xf32> to vector<8xf32>
    %214 = vector.shape_cast %213 : vector<8xf32> to vector<8x1xf32>
    %215 = vector.broadcast %214 : vector<8x1xf32> to vector<8x16xf32>
    %216 = arith.subf %212, %215 : vector<8x16xf32>
    %217 = math.exp %216 : vector<8x16xf32>
    %cst_68 = arith.constant dense<0.000000e+00> : vector<8xf32>
    %218 = vector.multi_reduction <add>, %217, %cst_68 [1] : vector<8x16xf32> to vector<8xf32>
    %219 = vector.shape_cast %218 : vector<8xf32> to vector<8x1xf32>
    %220 = vector.broadcast %219 : vector<8x1xf32> to vector<8x16xf32>
    %221 = arith.divf %217, %220 : vector<8x16xf32>
    %222 = vector.broadcast %207 : vector<1x32xf32> to vector<16x32xf32>
    %223 = arith.mulf %124, %222 : vector<16x32xf32>
    %cst_69 = arith.constant dense<0.000000e+00> : vector<8x32xf32>
    %224 = tpu.matmul %221, %223, %cst_69 {dimension_numbers = #tpu.dot_dimension_numbers<[1], [0], [0], [1], [0, 0, 1, 1], [], []>} : vector<8x16xf32>, vector<16x32xf32>, vector<8x32xf32> -> vector<8x32xf32>
    %225 = arith.addf %200, %224 : vector<8x32xf32>
    %226 = tpu.concatenate %121, %225 in 0 : vector<8x32xf32>, vector<8x32xf32> -> vector<16x32xf32>
    %227 = arith.addf %6, %226 : vector<16x32xf32>
    %c0_70 = arith.constant 0 : index
    %c0_71 = arith.constant 0 : index
    %228 = vector.load %arg9[%c0_70, %c0_71] : memref<32x32xf32, #tpu.memory_space<vmem>>, vector<32x32xf32>
    %cst_72 = arith.constant dense<0.000000e+00> : vector<16x32xf32>
    %229 = tpu.matmul %227, %228, %cst_72 {dimension_numbers = #tpu.dot_dimension_numbers<[1], [0], [0], [1], [0, 0, 1, 1], [], []>} : vector<16x32xf32>, vector<32x32xf32>, vector<16x32xf32> -> vector<16x32xf32>
    %c0_73 = arith.constant 0 : index
    %c0_74 = arith.constant 0 : index
    %230 = vector.load %arg10[%c0_73, %c0_74] : memref<1x32xf32, #tpu.memory_space<vmem>>, vector<1x32xf32>
    %231 = vector.broadcast %230 : vector<1x32xf32> to vector<16x32xf32>
    %232 = arith.addf %229, %231 : vector<16x32xf32>
    %cst_75 = arith.constant 0.000000e+00 : f32
    %233 = vector.broadcast %cst_75 : f32 to vector<16x32xf32>
    %234 = arith.maximumf %232, %233 : vector<16x32xf32>
    %235 = arith.addf %227, %234 : vector<16x32xf32>
    %c0_76 = arith.constant 0 : index
    %c0_77 = arith.constant 0 : index
    %236 = vector.load %arg11[%c0_76, %c0_77] : memref<16x32xf32, #tpu.memory_space<vmem>>, vector<16x32xf32>
    tpu.vector_store %arg11[%c0_76, %c0_77], %235 {strides = array<i32>} : memref<16x32xf32, #tpu.memory_space<vmem>>, vector<16x32xf32>,
    return
  }
  func.func @transform_0(%arg0: i32) -> (i32, i32) {
    %c0_i32 = arith.constant 0 : i32
    %c0_i32_0 = arith.constant 0 : i32
    return %arg0, %c0_i32 : i32, i32
  }
  func.func @transform_1(%arg0: i32) -> (i32, i32) {
    %c0_i32 = arith.constant 0 : i32
    %c0_i32_0 = arith.constant 0 : i32
    return %arg0, %c0_i32 : i32, i32
  }
  func.func @transform_2(%arg0: i32) -> (i32, i32) {
    %c0_i32 = arith.constant 0 : i32
    %c0_i32_0 = arith.constant 0 : i32
    %c0_i32_1 = arith.constant 0 : i32
    return %c0_i32, %c0_i32_0 : i32, i32
  }
  func.func @transform_3(%arg0: i32) -> (i32, i32) {
    %c0_i32 = arith.constant 0 : i32
    %c0_i32_0 = arith.constant 0 : i32
    %c0_i32_1 = arith.constant 0 : i32
    return %c0_i32, %c0_i32_0 : i32, i32
  }
  func.func @transform_4(%arg0: i32) -> (i32, i32) {
    %c0_i32 = arith.constant 0 : i32
    %c0_i32_0 = arith.constant 0 : i32
    %c0_i32_1 = arith.constant 0 : i32
    return %c0_i32, %c0_i32_0 : i32, i32
  }
  func.func @transform_5(%arg0: i32) -> (i32, i32) {
    %c0_i32 = arith.constant 0 : i32
    %c0_i32_0 = arith.constant 0 : i32
    %c0_i32_1 = arith.constant 0 : i32
    return %c0_i32, %c0_i32_0 : i32, i32
  }
  func.func @transform_6(%arg0: i32) -> (i32, i32) {
    %c0_i32 = arith.constant 0 : i32
    %c0_i32_0 = arith.constant 0 : i32
    %c0_i32_1 = arith.constant 0 : i32
    return %c0_i32, %c0_i32_0 : i32, i32
  }
  func.func @transform_7(%arg0: i32) -> (i32, i32) {
    %c0_i32 = arith.constant 0 : i32
    %c0_i32_0 = arith.constant 0 : i32
    %c0_i32_1 = arith.constant 0 : i32
    return %c0_i32, %c0_i32_0 : i32, i32
  }
  func.func @transform_8(%arg0: i32) -> (i32, i32) {
    %c0_i32 = arith.constant 0 : i32
    %c0_i32_0 = arith.constant 0 : i32
    %c0_i32_1 = arith.constant 0 : i32
    return %c0_i32, %c0_i32_0 : i32, i32
  }
  func.func @transform_9(%arg0: i32) -> (i32, i32) {
    %c0_i32 = arith.constant 0 : i32
    %c0_i32_0 = arith.constant 0 : i32
    %c0_i32_1 = arith.constant 0 : i32
    return %c0_i32, %c0_i32_0 : i32, i32
  }
  func.func @transform_10(%arg0: i32) -> (i32, i32) {
    %c0_i32 = arith.constant 0 : i32
    %c0_i32_0 = arith.constant 0 : i32
    return %arg0, %c0_i32 : i32, i32
  }
}

</mosaic_0001>

<llo_original>
// kernel: tpu_custom_call.1
$region0: #{tpu_custom_call.1}
  #allocation0 [shape = 'u32[]', space=smem, size = 0x4, offset = 0x4, fixed_abs, tag = 'smem constant byte address 0x4 - core index']
  #allocation1 [shape = 'u32[144,128]{1,0:T(1,128)}', space=vmem, size = 0x12000, scoped, tag = 'internal scratch']
  %s0 = inlined_call_operand.vmem [shape: f32[16,16], index: 0, kind: input, shape index: {}]
  %s1 = inlined_call_operand.vmem [shape: f32[32,16], index: 1, kind: input, shape index: {}]
  %s2 = inlined_call_operand.hbm [shape: f32[16,32], index: 2, kind: input, shape index: {}]
  %s3 = inlined_call_operand.vmem [shape: f32[1,32], index: 3, kind: input, shape index: {}]
  %s4 = inlined_call_operand.hbm [shape: f32[16,32], index: 4, kind: input, shape index: {}]
  %s5 = inlined_call_operand.vmem [shape: f32[1,32], index: 5, kind: input, shape index: {}]
  %s6 = inlined_call_operand.vmem [shape: f32[16,32], index: 6, kind: input, shape index: {}]
  %s7 = inlined_call_operand.vmem [shape: f32[1,32], index: 7, kind: input, shape index: {}]
  %s8 = inlined_call_operand.vmem [shape: f32[32,32], index: 8, kind: input, shape index: {}]
  %s9 = inlined_call_operand.vmem [shape: f32[1,32], index: 9, kind: input, shape index: {}]
  %s10 = inlined_call_operand.hbm [shape: f32[16,32], index: 10, kind: output, shape index: {}]
  %s11 = sld [smem:[#allocation0]]
  $region58: #{tpu_custom_call.1} parent=0
    _
  %s13 = ssub.s32 1, %s11
  %s14 = scalar_select 0, %s13, %s11
  $region1: #{tpu_custom_call.1} parent=0
    #allocation2 [shape = 'u8[8192]{0}', space=vmem, size = 0x2000, scoped, tag = 'input window, operand 2, single buffered']
    #allocation3 [shape = 's32[1]{0}', space=sflag, size = 0x4, scoped, tag = 'scoped memory for tpu_custom_call.1']
    #allocation4 [shape = 's32[1]{0}', space=sflag, size = 0x4, scoped, tag = 'scoped memory for tpu_custom_call.1']
    #allocation5 [shape = 'u8[8192]{0}', space=vmem, size = 0x2000, scoped, tag = 'input window, operand 4, single buffered']
    #allocation6 [shape = 's32[1]{0}', space=sflag, size = 0x4, scoped, tag = 'scoped memory for tpu_custom_call.1']
    #allocation7 [shape = 'u8[8192]{0}', space=vmem, size = 0x2000, scoped, tag = 'output window, operand 0, single buffered']
    %15 = vsyncpa [#allocation3], 0
    %16 = vsyncpa [#allocation6], 0
    %17 = vsyncpa [#allocation4], 0
    // Predicated region
    $region2: #{tpu_custom_call.1} parent=1 // pred_check
      _
    $region3: #{tpu_custom_call.1} parent=1 // pred_check_branch
      %19 = sbr.rel (0) target = $region5
    $region4: #{tpu_custom_call.1} parent=1 // pred_region
      _
    $region5: #{tpu_custom_call.1} parent=1 // pred_fallthru
      _
    // Predicated region
    $region6: #{tpu_custom_call.1} parent=1 // pred_check
      _
    $region7: #{tpu_custom_call.1} parent=1 // pred_check_branch
      %21 = sbr.rel (0) target = $region9
    $region8: #{tpu_custom_call.1} parent=1 // pred_region
      _
    $region9: #{tpu_custom_call.1} parent=1 // pred_fallthru
      _
    // Predicated region
    $region10: #{tpu_custom_call.1} parent=1 // pred_check
      _
    $region11: #{tpu_custom_call.1} parent=1 // pred_check_branch
      %23 = sbr.rel (0) target = $region13
    $region12: #{tpu_custom_call.1} parent=1 // pred_region
      %s25 = ssub.s32 256, 256
      %26 = vsyncadd [#allocation3], %s25
      %s27 = sshll.u32 [#allocation2], 4
      %s28 = int_to_ptr.vmem [resolvable:$true] %s27
      %33 = dma.hbm_to_vmem [thread:$0]  %s2, 256, %s28, [#allocation3], 128, 128, 8
    $region13: #{tpu_custom_call.1} parent=1 // pred_fallthru
      _
    // Predicated region
    $region14: #{tpu_custom_call.1} parent=1 // pred_check
      _
    $region15: #{tpu_custom_call.1} parent=1 // pred_check_branch
      %35 = sbr.rel (0) target = $region17
    $region16: #{tpu_custom_call.1} parent=1 // pred_region
      _
    $region17: #{tpu_custom_call.1} parent=1 // pred_fallthru
      _
    // Predicated region
    $region18: #{tpu_custom_call.1} parent=1 // pred_check
      _
    $region19: #{tpu_custom_call.1} parent=1 // pred_check_branch
      %37 = sbr.rel (0) target = $region21
    $region20: #{tpu_custom_call.1} parent=1 // pred_region
      %s39 = ssub.s32 256, 256
      %40 = vsyncadd [#allocation6], %s39
      %s41 = sshll.u32 [#allocation5], 4
      %s42 = int_to_ptr.vmem [resolvable:$true] %s41
      %47 = dma.hbm_to_vmem [thread:$0]  %s4, 256, %s42, [#allocation6], 128, 128, 8
    $region21: #{tpu_custom_call.1} parent=1 // pred_fallthru
      _
    // Predicated region
    $region22: #{tpu_custom_call.1} parent=1 // pred_check
      _
    $region23: #{tpu_custom_call.1} parent=1 // pred_check_branch
      %49 = sbr.rel (0) target = $region25
    $region24: #{tpu_custom_call.1} parent=1 // pred_region
      _
    $region25: #{tpu_custom_call.1} parent=1 // pred_fallthru
      _
    // Predicated region
    $region26: #{tpu_custom_call.1} parent=1 // pred_check
      _
    $region27: #{tpu_custom_call.1} parent=1 // pred_check_branch
      %51 = sbr.rel (0) target = $region29
    $region28: #{tpu_custom_call.1} parent=1 // pred_region
      _
    $region29: #{tpu_custom_call.1} parent=1 // pred_fallthru
      _
    // Predicated region
    $region30: #{tpu_custom_call.1} parent=1 // pred_check
      _
    $region31: #{tpu_custom_call.1} parent=1 // pred_check_branch
      %53 = sbr.rel (0) target = $region33
    $region32: #{tpu_custom_call.1} parent=1 // pred_region
      _
    $region33: #{tpu_custom_call.1} parent=1 // pred_fallthru
      _
    // Predicated region
    $region34: #{tpu_custom_call.1} parent=1 // pred_check
      _
    $region35: #{tpu_custom_call.1} parent=1 // pred_check_branch
      %55 = sbr.rel (0) target = $region37
    $region36: #{tpu_custom_call.1} parent=1 // pred_region
      _
    $region37: #{tpu_custom_call.1} parent=1 // pred_fallthru
      _
    // Predicated region
    $region38: #{tpu_custom_call.1} parent=1 // pred_check
      _
    $region39: #{tpu_custom_call.1} parent=1 // pred_check_branch
      %57 = sbr.rel (0) target = $region41
    $region40: #{tpu_custom_call.1} parent=1 // pred_region
      _
    $region41: #{tpu_custom_call.1} parent=1 // pred_fallthru
      _
    // Predicated region
    $region42: #{tpu_custom_call.1} parent=1 // pred_check
      _
    $region43: #{tpu_custom_call.1} parent=1 // pred_check_branch
      %59 = sbr.rel (0) target = $region45
    $region44: #{tpu_custom_call.1} parent=1 // pred_region
      %60 = dma.done [#allocation3], 256
    $region45: #{tpu_custom_call.1} parent=1 // pred_fallthru
      _
    // Predicated region
    $region46: #{tpu_custom_call.1} parent=1 // pred_check
      _
    $region47: #{tpu_custom_call.1} parent=1 // pred_check_branch
      %62 = sbr.rel (0) target = $region49
    $region48: #{tpu_custom_call.1} parent=1 // pred_region
      %63 = dma.done [#allocation6], 256
    $region49: #{tpu_custom_call.1} parent=1 // pred_fallthru
      _
    %v64 = vld [vmem:[%s0] sm:$0xff]
    %v65 = vld [vmem:[%s0 + $0x8] sm:$0xff]
    %v66 = vld [vmem:[%s1] sm:$0xff]
    %v67 = vld [vmem:[%s1 + $0x8] sm:$0xff]
    %v68 = vld [vmem:[%s1 + $0x10] sm:$0xff]
    %v69 = vld [vmem:[%s1 + $0x18] sm:$0xff]
    %v70 = vld [vmem:[#allocation2] sm:$0xff]
    %v71 = vld [vmem:[#allocation2 + $0x8] sm:$0xff]
    %v72 = vld [vmem:[%s3] sm:$0x1]
    %v74 = vlaneseq
    %v75 = vshrl.u32 %v74, 7
    %v76 = vsub.s32 0, %v75
    %v77 = vrot.slane %v72, %v76
    %vm79 = vcmask 130048
    %v81 = vsel %vm79, %v64, 0
    %v84 = vsel %vm79, %v65, 0
    %86 = vmatprep.subr.mxu0 0.0
    %87 = vmatpush1.msra.mxu0 %v70
    %88 = vmatprep.subr.mxu0 0.0
    %89 = vmatpush1.msra.mxu0 %v71
    %90 = vmatprep.subr.mxu0 0.0
    %91 = vmatpush1.msra.mxu0 0.0
    %92 = vmatprep.subr.mxu0 0.0
    %93 = vmatpush1.msra.mxu0 0.0
    %94 = vmatprep.subr.mxu0 0.0
    %95 = vmatpush1.msra.mxu0 0.0
    %96 = vmatprep.subr.mxu0 0.0
    %97 = vmatpush1.msra.mxu0 0.0
    %98 = vmatprep.subr.mxu0 0.0
    %99 = vmatpush1.msra.mxu0 0.0
    %100 = vmatprep.subr.mxu0 0.0
    %101 = vmatpush1.msra.mxu0 0.0
    %102 = vmatprep.subr.mxu0 0.0
    %103 = vmatpush1.msra.mxu0 0.0
    %104 = vmatprep.subr.mxu0 0.0
    %105 = vmatpush1.msra.mxu0 0.0
    %106 = vmatprep.subr.mxu0 0.0
    %107 = vmatpush1.msra.mxu0 0.0
    %108 = vmatprep.subr.mxu0 0.0
    %109 = vmatpush1.msra.mxu0 0.0
    %110 = vmatprep.subr.mxu0 0.0
    %111 = vmatpush1.msra.mxu0 0.0
    %112 = vmatprep.subr.mxu0 0.0
    %113 = vmatpush1.msra.mxu0 0.0
    %114 = vmatprep.subr.mxu0 0.0
    %115 = vmatpush1.msra.mxu0 0.0
    %116 = vmatprep.subr.mxu0 0.0
    %117 = vmatpush1.msra.mxu0 0.0
    %118 = vmatprep.subr.mxu0 0.0
    %119 = vmatpush1.msra.mxu0 0.0
    %120 = vmatprep.subr.mxu0 0.0
    %121 = vmatpush1.msra.mxu0 0.0
    %122 = vmatprep.subr.mxu0 0.0
    %123 = vmatpush1.msra.mxu0 0.0
    %124 = vmatprep.subr.mxu0 0.0
    %125 = vmatpush1.msra.mxu0 0.0
    %126 = vmatprep.subr.mxu0 0.0
    %127 = vmatpush1.msra.mxu0 0.0
    %128 = vmatprep.subr.mxu0 0.0
    %129 = vmatpush1.msra.mxu0 0.0
    %130 = vmatprep.subr.mxu0 0.0
    %131 = vmatpush1.msra.mxu0 0.0
    %132 = vmatprep.subr.mxu0 0.0
    %133 = vmatpush1.msra.mxu0 0.0
    %134 = vmatprep.subr.mxu0 0.0
    %135 = vmatpush1.msra.mxu0 0.0
    %136 = vmatprep.subr.mxu0 0.0
    %137 = vmatpush1.msra.mxu0 0.0
    %138 = vmatprep.subr.mxu0 0.0
    %139 = vmatpush1.msra.mxu0 0.0
    %140 = vmatprep.subr.mxu0 0.0
    %141 = vmatpush1.msra.mxu0 0.0
    %142 = vmatprep.subr.mxu0 0.0
    %143 = vmatpush1.msra.mxu0 0.0
    %144 = vmatprep.subr.mxu0 0.0
    %145 = vmatpush1.msra.mxu0 0.0
    %146 = vmatprep.subr.mxu0 0.0
    %147 = vmatpush1.msra.mxu0 0.0
    %148 = vmatprep.subr.mxu0 0.0
    %149 = vmatpush1.msra.mxu0 0.0
    %150 = vmatprep.mubr.f32.mxu0 0.0
    %151 = vmatmul.mubr.f32.gmra.mrb[0].mxu0 %v81
    %v152 = vpop.f32.mrb[0].mxu0
    %v153 = vadd.f32 %v77, %v152
    %v154 = vpop.f32.mrb[0].mxu0
    %155 = vmatprep.mubr.f32.mxu0 0.0
    %156 = vmatmul.mubr.f32.gmra.mrb[0].mxu0 %v84
    %v157 = vpop.f32.mrb[0].mxu0
    %v158 = vadd.f32 %v77, %v157
    %v159 = vpop.f32.mrb[0].mxu0
    %160 = vdwg.mxu0
    %v161 = vld [vmem:[#allocation5] sm:$0xff]
    %v162 = vld [vmem:[#allocation5 + $0x8] sm:$0xff]
    %v163 = vld [vmem:[%s5] sm:$0x1]
    %v165 = vlaneseq
    %v166 = vshrl.u32 %v165, 7
    %v167 = vsub.s32 0, %v166
    %v168 = vrot.slane %v163, %v167
    %v171 = vsel %vm79, %v66, 0
    %v174 = vsel %vm79, %v67, 0
    %v177 = vsel %vm79, %v68, 0
    %v180 = vsel %vm79, %v69, 0
    %182 = vmatprep.subr.mxu0 0.0
    %183 = vmatpush1.msra.mxu0 %v161
    %184 = vmatprep.subr.mxu0 0.0
    %185 = vmatpush1.msra.mxu0 %v162
    %186 = vmatprep.subr.mxu0 0.0
    %187 = vmatpush1.msra.mxu0 0.0
    %188 = vmatprep.subr.mxu0 0.0
    %189 = vmatpush1.msra.mxu0 0.0
    %190 = vmatprep.subr.mxu0 0.0
    %191 = vmatpush1.msra.mxu0 0.0
    %192 = vmatprep.subr.mxu0 0.0
    %193 = vmatpush1.msra.mxu0 0.0
    %194 = vmatprep.subr.mxu0 0.0
    %195 = vmatpush1.msra.mxu0 0.0
    %196 = vmatprep.subr.mxu0 0.0
    %197 = vmatpush1.msra.mxu0 0.0
    %198 = vmatprep.subr.mxu0 0.0
    %199 = vmatpush1.msra.mxu0 0.0
    %200 = vmatprep.subr.mxu0 0.0
    %201 = vmatpush1.msra.mxu0 0.0
    %202 = vmatprep.subr.mxu0 0.0
    %203 = vmatpush1.msra.mxu0 0.0
    %204 = vmatprep.subr.mxu0 0.0
    %205 = vmatpush1.msra.mxu0 0.0
    %206 = vmatprep.subr.mxu0 0.0
    %207 = vmatpush1.msra.mxu0 0.0
    %208 = vmatprep.subr.mxu0 0.0
    %209 = vmatpush1.msra.mxu0 0.0
    %210 = vmatprep.subr.mxu0 0.0
    %211 = vmatpush1.msra.mxu0 0.0
    %212 = vmatprep.subr.mxu0 0.0
    %213 = vmatpush1.msra.mxu0 0.0
    %214 = vmatprep.subr.mxu0 0.0
    %215 = vmatpush1.msra.mxu0 0.0
    %216 = vmatprep.subr.mxu0 0.0
    %217 = vmatpush1.msra.mxu0 0.0
    %218 = vmatprep.subr.mxu0 0.0
    %219 = vmatpush1.msra.mxu0 0.0
    %220 = vmatprep.subr.mxu0 0.0
    %221 = vmatpush1.msra.mxu0 0.0
    %222 = vmatprep.subr.mxu0 0.0
    %223 = vmatpush1.msra.mxu0 0.0
    %224 = vmatprep.subr.mxu0 0.0
    %225 = vmatpush1.msra.mxu0 0.0
    %226 = vmatprep.subr.mxu0 0.0
    %227 = vmatpush1.msra.mxu0 0.0
    %228 = vmatprep.subr.mxu0 0.0
    %229 = vmatpush1.msra.mxu0 0.0
    %230 = vmatprep.subr.mxu0 0.0
    %231 = vmatpush1.msra.mxu0 0.0
    %232 = vmatprep.subr.mxu0 0.0
    %233 = vmatpush1.msra.mxu0 0.0
    %234 = vmatprep.subr.mxu0 0.0
    %235 = vmatpush1.msra.mxu0 0.0
    %236 = vmatprep.subr.mxu0 0.0
    %237 = vmatpush1.msra.mxu0 0.0
    %238 = vmatprep.subr.mxu0 0.0
    %239 = vmatpush1.msra.mxu0 0.0
    %240 = vmatprep.subr.mxu0 0.0
    %241 = vmatpush1.msra.mxu0 0.0
    %242 = vmatprep.subr.mxu0 0.0
    %243 = vmatpush1.msra.mxu0 0.0
    %244 = vmatprep.subr.mxu0 0.0
    %245 = vmatpush1.msra.mxu0 0.0
    %246 = vmatprep.mubr.f32.mxu0 0.0
    %247 = vmatmul.mubr.f32.gmra.mrb[0].mxu0 %v171
    %v248 = vpop.f32.mrb[0].mxu0
    %v249 = vadd.f32 %v168, %v248
    %v250 = vpop.f32.mrb[0].mxu0
    %251 = vmatprep.mubr.f32.mxu0 0.0
    %252 = vmatmul.mubr.f32.gmra.mrb[0].mxu0 %v174
    %v253 = vpop.f32.mrb[0].mxu0
    %v254 = vadd.f32 %v168, %v253
    %v255 = vpop.f32.mrb[0].mxu0
    %256 = vmatprep.mubr.f32.mxu0 0.0
    %257 = vmatmul.mubr.f32.gmra.mrb[0].mxu0 %v177
    %v258 = vpop.f32.mrb[0].mxu0
    %v259 = vadd.f32 %v168, %v258
    %v260 = vpop.f32.mrb[0].mxu0
    %261 = vmatprep.mubr.f32.mxu0 0.0
    %262 = vmatmul.mubr.f32.gmra.mrb[0].mxu0 %v180
    %v263 = vpop.f32.mrb[0].mxu0
    %v264 = vadd.f32 %v168, %v263
    %v265 = vpop.f32.mrb[0].mxu0
    %266 = vdwg.mxu0
    %v267 = vld [vmem:[%s6] sm:$0xff]
    %v268 = vld [vmem:[%s6 + $0x8] sm:$0xff]
    %v269 = vld [vmem:[%s7] sm:$0x1]
    %v271 = vlaneseq
    %v272 = vshrl.u32 %v271, 7
    %v273 = vsub.s32 0, %v272
    %v274 = vrot.slane %v269, %v273
    %276 = vmatprep.subr.mxu0 0.0
    %277 = vmatpush1.msra.mxu0 %v267
    %278 = vmatprep.subr.mxu0 0.0
    %279 = vmatpush1.msra.mxu0 %v268
    %280 = vmatprep.subr.mxu0 0.0
    %281 = vmatpush1.msra.mxu0 0.0
    %282 = vmatprep.subr.mxu0 0.0
    %283 = vmatpush1.msra.mxu0 0.0
    %284 = vmatprep.subr.mxu0 0.0
    %285 = vmatpush1.msra.mxu0 0.0
    %286 = vmatprep.subr.mxu0 0.0
    %287 = vmatpush1.msra.mxu0 0.0
    %288 = vmatprep.subr.mxu0 0.0
    %289 = vmatpush1.msra.mxu0 0.0
    %290 = vmatprep.subr.mxu0 0.0
    %291 = vmatpush1.msra.mxu0 0.0
    %292 = vmatprep.subr.mxu0 0.0
    %293 = vmatpush1.msra.mxu0 0.0
    %294 = vmatprep.subr.mxu0 0.0
    %295 = vmatpush1.msra.mxu0 0.0
    %296 = vmatprep.subr.mxu0 0.0
    %297 = vmatpush1.msra.mxu0 0.0
    %298 = vmatprep.subr.mxu0 0.0
    %299 = vmatpush1.msra.mxu0 0.0
    %300 = vmatprep.subr.mxu0 0.0
    %301 = vmatpush1.msra.mxu0 0.0
    %302 = vmatprep.subr.mxu0 0.0
    %303 = vmatpush1.msra.mxu0 0.0
    %304 = vmatprep.subr.mxu0 0.0
    %305 = vmatpush1.msra.mxu0 0.0
    %306 = vmatprep.subr.mxu0 0.0
    %307 = vmatpush1.msra.mxu0 0.0
    %308 = vmatprep.subr.mxu0 0.0
    %309 = vmatpush1.msra.mxu0 0.0
    %310 = vmatprep.subr.mxu0 0.0
    %311 = vmatpush1.msra.mxu0 0.0
    %312 = vmatprep.subr.mxu0 0.0
    %313 = vmatpush1.msra.mxu0 0.0
    %314 = vmatprep.subr.mxu0 0.0
    %315 = vmatpush1.msra.mxu0 0.0
    %316 = vmatprep.subr.mxu0 0.0
    %317 = vmatpush1.msra.mxu0 0.0
    %318 = vmatprep.subr.mxu0 0.0
    %319 = vmatpush1.msra.mxu0 0.0
    %320 = vmatprep.subr.mxu0 0.0
    %321 = vmatpush1.msra.mxu0 0.0
    %322 = vmatprep.subr.mxu0 0.0
    %323 = vmatpush1.msra.mxu0 0.0
    %324 = vmatprep.subr.mxu0 0.0
    %325 = vmatpush1.msra.mxu0 0.0
    %326 = vmatprep.subr.mxu0 0.0
    %327 = vmatpush1.msra.mxu0 0.0
    %328 = vmatprep.subr.mxu0 0.0
    %329 = vmatpush1.msra.mxu0 0.0
    %330 = vmatprep.subr.mxu0 0.0
    %331 = vmatpush1.msra.mxu0 0.0
    %332 = vmatprep.subr.mxu0 0.0
    %333 = vmatpush1.msra.mxu0 0.0
    %334 = vmatprep.subr.mxu0 0.0
    %335 = vmatpush1.msra.mxu0 0.0
    %336 = vmatprep.subr.mxu0 0.0
    %337 = vmatpush1.msra.mxu0 0.0
    %338 = vmatprep.subr.mxu0 0.0
    %339 = vmatpush1.msra.mxu0 0.0
    %340 = vmatprep.mubr.f32.mxu0 0.0
    %341 = vmatmul.mubr.f32.gmra.mrb[0].mxu0 %v171
    %v342 = vpop.f32.mrb[0].mxu0
    %v343 = vadd.f32 %v274, %v342
    %v344 = vpop.f32.mrb[0].mxu0
    %345 = vmatprep.mubr.f32.mxu0 0.0
    %346 = vmatmul.mubr.f32.gmra.mrb[0].mxu0 %v174
    %v347 = vpop.f32.mrb[0].mxu0
    %v348 = vadd.f32 %v274, %v347
    %v349 = vpop.f32.mrb[0].mxu0
    %350 = vmatprep.mubr.f32.mxu0 0.0
    %351 = vmatmul.mubr.f32.gmra.mrb[0].mxu0 %v177
    %v352 = vpop.f32.mrb[0].mxu0
    %v353 = vadd.f32 %v274, %v352
    %v354 = vpop.f32.mrb[0].mxu0
    %355 = vmatprep.mubr.f32.mxu0 0.0
    %356 = vmatmul.mubr.f32.gmra.mrb[0].mxu0 %v180
    %v357 = vpop.f32.mrb[0].mxu0
    %v358 = vadd.f32 %v274, %v357
    %v359 = vpop.f32.mrb[0].mxu0
    %360 = vdwg.mxu0
    %v361 = vlaneseq
    %v362 = vand.u32 %v361, 127
    %vm363 = vcmp.ge.s32.totalorder %v362, 0
    %vm364 = vcmp.lt.s32.totalorder %v362, 8
    %vm365 = vmand %vm363, %vm364
    %v366 = vsel %vm365, 1, 0
    %v367 = vcvt.s32.f32 %v366
    %v368 = vmul.f32 %v153, %v367
    %vm369 = vcmask 261120
    %v371 = vsel %vm369, %v368, 0
    %v374 = vsel %vm369, %v249, 0
    %v377 = vsel %vm369, %v254, 0
    %379 = vmatprep.subr.mxu0 0.0
    %380 = vmatpush1.xpose.msra.mxu0 %v374
    %381 = vmatprep.subr.mxu0 0.0
    %382 = vmatpush1.xpose.msra.mxu0 %v377
    %383 = vmatprep.subr.mxu0 0.0
    %384 = vmatpush1.xpose.msra.mxu0 0.0
    %385 = vmatprep.subr.mxu0 0.0
    %386 = vmatpush1.xpose.msra.mxu0 0.0
    %387 = vmatprep.subr.mxu0 0.0
    %388 = vmatpush1.xpose.msra.mxu0 0.0
    %389 = vmatprep.subr.mxu0 0.0
    %390 = vmatpush1.xpose.msra.mxu0 0.0
    %391 = vmatprep.subr.mxu0 0.0
    %392 = vmatpush1.xpose.msra.mxu0 0.0
    %393 = vmatprep.subr.mxu0 0.0
    %394 = vmatpush1.xpose.msra.mxu0 0.0
    %395 = vmatprep.subr.mxu0 0.0
    %396 = vmatpush1.xpose.msra.mxu0 0.0
    %397 = vmatprep.subr.mxu0 0.0
    %398 = vmatpush1.xpose.msra.mxu0 0.0
    %399 = vmatprep.subr.mxu0 0.0
    %400 = vmatpush1.xpose.msra.mxu0 0.0
    %401 = vmatprep.subr.mxu0 0.0
    %402 = vmatpush1.xpose.msra.mxu0 0.0
    %403 = vmatprep.subr.mxu0 0.0
    %404 = vmatpush1.xpose.msra.mxu0 0.0
    %405 = vmatprep.subr.mxu0 0.0
    %406 = vmatpush1.xpose.msra.mxu0 0.0
    %407 = vmatprep.subr.mxu0 0.0
    %408 = vmatpush1.xpose.msra.mxu0 0.0
    %409 = vmatprep.subr.mxu0 0.0
    %410 = vmatpush1.xpose.msra.mxu0 0.0
    %411 = vmatprep.subr.mxu0 0.0
    %412 = vmatpush1.xpose.msra.mxu0 0.0
    %413 = vmatprep.subr.mxu0 0.0
    %414 = vmatpush1.xpose.msra.mxu0 0.0
    %415 = vmatprep.subr.mxu0 0.0
    %416 = vmatpush1.xpose.msra.mxu0 0.0
    %417 = vmatprep.subr.mxu0 0.0
    %418 = vmatpush1.xpose.msra.mxu0 0.0
    %419 = vmatprep.subr.mxu0 0.0
    %420 = vmatpush1.xpose.msra.mxu0 0.0
    %421 = vmatprep.subr.mxu0 0.0
    %422 = vmatpush1.xpose.msra.mxu0 0.0
    %423 = vmatprep.subr.mxu0 0.0
    %424 = vmatpush1.xpose.msra.mxu0 0.0
    %425 = vmatprep.subr.mxu0 0.0
    %426 = vmatpush1.xpose.msra.mxu0 0.0
    %427 = vmatprep.subr.mxu0 0.0
    %428 = vmatpush1.xpose.msra.mxu0 0.0
    %429 = vmatprep.subr.mxu0 0.0
    %430 = vmatpush1.xpose.msra.mxu0 0.0
    %431 = vmatprep.subr.mxu0 0.0
    %432 = vmatpush1.xpose.msra.mxu0 0.0
    %433 = vmatprep.subr.mxu0 0.0
    %434 = vmatpush1.xpose.msra.mxu0 0.0
    %435 = vmatprep.subr.mxu0 0.0
    %436 = vmatpush1.xpose.msra.mxu0 0.0
    %437 = vmatprep.subr.mxu0 0.0
    %438 = vmatpush1.xpose.msra.mxu0 0.0
    %439 = vmatprep.subr.mxu0 0.0
    %440 = vmatpush1.xpose.msra.mxu0 0.0
    %441 = vmatprep.subr.mxu0 0.0
    %442 = vmatpush1.xpose.msra.mxu0 0.0
    %443 = vmatprep.mubr.f32.mxu0 0.0
    %444 = vmatmul.mubr.f32.gmra.mrb[0].mxu0 %v371
    %v445 = vpop.f32.mrb[0].mxu0
    %v446 = vadd.f32 0.0, %v445
    %v447 = vpop.f32.mrb[0].mxu0
    %448 = vdwg.mxu0
    %v449 = vmul.f32 %v446, 0.17677669
    %v450 = vsel %vm79, %v449, -inf
    %451 = vmax.xlane.f32.xlu0 %v450
    %v452 = vpop.xlane.xlu0 %451
    %v453 = vsub.f32 %v449, %v452
    %v454 = vmul.f32 %v453, 1.442695
    %v455 = vpow.pop %v454
    %v456 = vsel %vm79, %v455, 0.0
    %457 = vadd.xlane.f32.xlu0 %v456
    %v458 = vpop.xlane.xlu0 %457
    %v459 = vrcp.pop %v458
    %v460 = vmul.f32 %v455, %v459
    %v461 = vmul.f32 %v343, %v367
    %v462 = vmul.f32 %v348, %v367
    %vm463 = vcmp.ge.s32.totalorder %v362, 8
    %vm464 = vcmp.lt.s32.totalorder %v362, 16
    %vm465 = vmand %vm463, %vm464
    %v466 = vsel %vm465, 1, 0
    %v467 = vcvt.s32.f32 %v466
    %v468 = vmul.f32 %v153, %v467
    %v470 = vsel %vm369, %v468, 0
    %472 = vmatprep.subr.mxu0 0.0
    %473 = vmatpush1.xpose.msra.mxu0 %v374
    %474 = vmatprep.subr.mxu0 0.0
    %475 = vmatpush1.xpose.msra.mxu0 %v377
    %476 = vmatprep.subr.mxu0 0.0
    %477 = vmatpush1.xpose.msra.mxu0 0.0
    %478 = vmatprep.subr.mxu0 0.0
    %479 = vmatpush1.xpose.msra.mxu0 0.0
    %480 = vmatprep.subr.mxu0 0.0
    %481 = vmatpush1.xpose.msra.mxu0 0.0
    %482 = vmatprep.subr.mxu0 0.0
    %483 = vmatpush1.xpose.msra.mxu0 0.0
    %484 = vmatprep.subr.mxu0 0.0
    %485 = vmatpush1.xpose.msra.mxu0 0.0
    %486 = vmatprep.subr.mxu0 0.0
    %487 = vmatpush1.xpose.msra.mxu0 0.0
    %488 = vmatprep.subr.mxu0 0.0
    %489 = vmatpush1.xpose.msra.mxu0 0.0
    %490 = vmatprep.subr.mxu0 0.0
    %491 = vmatpush1.xpose.msra.mxu0 0.0
    %492 = vmatprep.subr.mxu0 0.0
    %493 = vmatpush1.xpose.msra.mxu0 0.0
    %494 = vmatprep.subr.mxu0 0.0
    %495 = vmatpush1.xpose.msra.mxu0 0.0
    %496 = vmatprep.subr.mxu0 0.0
    %497 = vmatpush1.xpose.msra.mxu0 0.0
    %498 = vmatprep.subr.mxu0 0.0
    %499 = vmatpush1.xpose.msra.mxu0 0.0
    %500 = vmatprep.subr.mxu0 0.0
    %501 = vmatpush1.xpose.msra.mxu0 0.0
    %502 = vmatprep.subr.mxu0 0.0
    %503 = vmatpush1.xpose.msra.mxu0 0.0
    %504 = vmatprep.subr.mxu0 0.0
    %505 = vmatpush1.xpose.msra.mxu0 0.0
    %506 = vmatprep.subr.mxu0 0.0
    %507 = vmatpush1.xpose.msra.mxu0 0.0
    %508 = vmatprep.subr.mxu0 0.0
    %509 = vmatpush1.xpose.msra.mxu0 0.0
    %510 = vmatprep.subr.mxu0 0.0
    %511 = vmatpush1.xpose.msra.mxu0 0.0
    %512 = vmatprep.subr.mxu0 0.0
    %513 = vmatpush1.xpose.msra.mxu0 0.0
    %514 = vmatprep.subr.mxu0 0.0
    %515 = vmatpush1.xpose.msra.mxu0 0.0
    %516 = vmatprep.subr.mxu0 0.0
    %517 = vmatpush1.xpose.msra.mxu0 0.0
    %518 = vmatprep.subr.mxu0 0.0
    %519 = vmatpush1.xpose.msra.mxu0 0.0
    %520 = vmatprep.subr.mxu0 0.0
    %521 = vmatpush1.xpose.msra.mxu0 0.0
    %522 = vmatprep.subr.mxu0 0.0
    %523 = vmatpush1.xpose.msra.mxu0 0.0
    %524 = vmatprep.subr.mxu0 0.0
    %525 = vmatpush1.xpose.msra.mxu0 0.0
    %526 = vmatprep.subr.mxu0 0.0
    %527 = vmatpush1.xpose.msra.mxu0 0.0
    %528 = vmatprep.subr.mxu0 0.0
    %529 = vmatpush1.xpose.msra.mxu0 0.0
    %530 = vmatprep.subr.mxu0 0.0
    %531 = vmatpush1.xpose.msra.mxu0 0.0
    %532 = vmatprep.subr.mxu0 0.0
    %533 = vmatpush1.xpose.msra.mxu0 0.0
    %534 = vmatprep.subr.mxu0 0.0
    %535 = vmatpush1.xpose.msra.mxu0 0.0
    %536 = vmatprep.mubr.f32.mxu0 0.0
    %537 = vmatmul.mubr.f32.gmra.mrb[0].mxu0 %v470
    %v538 = vpop.f32.mrb[0].mxu0
    %v539 = vadd.f32 0.0, %v538
    %v540 = vpop.f32.mrb[0].mxu0
    %541 = vdwg.mxu0
    %v542 = vmul.f32 %v539, 0.17677669
    %v543 = vsel %vm79, %v542, -inf
    %544 = vmax.xlane.f32.xlu0 %v543
    %v545 = vpop.xlane.xlu0 %544
    %v546 = vsub.f32 %v542, %v545
    %v547 = vmul.f32 %v546, 1.442695
    %v548 = vpow.pop %v547
    %v549 = vsel %vm79, %v548, 0.0
    %550 = vadd.xlane.f32.xlu0 %v549
    %v551 = vpop.xlane.xlu0 %550
    %v552 = vrcp.pop %v551
    %v553 = vmul.f32 %v548, %v552
    %v554 = vmul.f32 %v343, %v467
    %v555 = vmul.f32 %v348, %v467
    %v557 = vsel %vm79, %v553, 0
    %559 = vmatprep.subr.mxu0 0.0
    %560 = vmatpush1.msra.mxu0 %v554
    %561 = vmatprep.subr.mxu0 0.0
    %562 = vmatpush1.msra.mxu0 %v555
    %563 = vmatprep.subr.mxu0 0.0
    %564 = vmatpush1.msra.mxu0 0.0
    %565 = vmatprep.subr.mxu0 0.0
    %566 = vmatpush1.msra.mxu0 0.0
    %567 = vmatprep.subr.mxu0 0.0
    %568 = vmatpush1.msra.mxu0 0.0
    %569 = vmatprep.subr.mxu0 0.0
    %570 = vmatpush1.msra.mxu0 0.0
    %571 = vmatprep.subr.mxu0 0.0
    %572 = vmatpush1.msra.mxu0 0.0
    %573 = vmatprep.subr.mxu0 0.0
    %574 = vmatpush1.msra.mxu0 0.0
    %575 = vmatprep.subr.mxu0 0.0
    %576 = vmatpush1.msra.mxu0 0.0
    %577 = vmatprep.subr.mxu0 0.0
    %578 = vmatpush1.msra.mxu0 0.0
    %579 = vmatprep.subr.mxu0 0.0
    %580 = vmatpush1.msra.mxu0 0.0
    %581 = vmatprep.subr.mxu0 0.0
    %582 = vmatpush1.msra.mxu0 0.0
    %583 = vmatprep.subr.mxu0 0.0
    %584 = vmatpush1.msra.mxu0 0.0
    %585 = vmatprep.subr.mxu0 0.0
    %586 = vmatpush1.msra.mxu0 0.0
    %587 = vmatprep.subr.mxu0 0.0
    %588 = vmatpush1.msra.mxu0 0.0
    %589 = vmatprep.subr.mxu0 0.0
    %590 = vmatpush1.msra.mxu0 0.0
    %591 = vmatprep.subr.mxu0 0.0
    %592 = vmatpush1.msra.mxu0 0.0
    %593 = vmatprep.subr.mxu0 0.0
    %594 = vmatpush1.msra.mxu0 0.0
    %595 = vmatprep.subr.mxu0 0.0
    %596 = vmatpush1.msra.mxu0 0.0
    %597 = vmatprep.subr.mxu0 0.0
    %598 = vmatpush1.msra.mxu0 0.0
    %599 = vmatprep.subr.mxu0 0.0
    %600 = vmatpush1.msra.mxu0 0.0
    %601 = vmatprep.subr.mxu0 0.0
    %602 = vmatpush1.msra.mxu0 0.0
    %603 = vmatprep.subr.mxu0 0.0
    %604 = vmatpush1.msra.mxu0 0.0
    %605 = vmatprep.subr.mxu0 0.0
    %606 = vmatpush1.msra.mxu0 0.0
    %607 = vmatprep.subr.mxu0 0.0
    %608 = vmatpush1.msra.mxu0 0.0
    %609 = vmatprep.subr.mxu0 0.0
    %610 = vmatpush1.msra.mxu0 0.0
    %611 = vmatprep.subr.mxu0 0.0
    %612 = vmatpush1.msra.mxu0 0.0
    %613 = vmatprep.subr.mxu0 0.0
    %614 = vmatpush1.msra.mxu0 0.0
    %615 = vmatprep.subr.mxu0 0.0
    %616 = vmatpush1.msra.mxu0 0.0
    %617 = vmatprep.subr.mxu0 0.0
    %618 = vmatpush1.msra.mxu0 0.0
    %619 = vmatprep.subr.mxu0 0.0
    %620 = vmatpush1.msra.mxu0 0.0
    %621 = vmatprep.subr.mxu0 0.0
    %622 = vmatpush1.msra.mxu0 0.0
    %623 = vmatprep.mubr.f32.mxu0 0.0
    %624 = vmatmul.mubr.f32.gmra.mrb[0].mxu0 %v557
    %v625 = vpop.f32.mrb[0].mxu0
    %v626 = vadd.f32 0.0, %v625
    %v627 = vpop.f32.mrb[0].mxu0
    %628 = vdwg.mxu0
    %v630 = vsel %vm79, %v460, 0
    %632 = vmatprep.subr.mxu0 0.0
    %633 = vmatpush1.msra.mxu0 %v461
    %634 = vmatprep.subr.mxu0 0.0
    %635 = vmatpush1.msra.mxu0 %v462
    %636 = vmatprep.subr.mxu0 0.0
    %637 = vmatpush1.msra.mxu0 0.0
    %638 = vmatprep.subr.mxu0 0.0
    %639 = vmatpush1.msra.mxu0 0.0
    %640 = vmatprep.subr.mxu0 0.0
    %641 = vmatpush1.msra.mxu0 0.0
    %642 = vmatprep.subr.mxu0 0.0
    %643 = vmatpush1.msra.mxu0 0.0
    %644 = vmatprep.subr.mxu0 0.0
    %645 = vmatpush1.msra.mxu0 0.0
    %646 = vmatprep.subr.mxu0 0.0
    %647 = vmatpush1.msra.mxu0 0.0
    %648 = vmatprep.subr.mxu0 0.0
    %649 = vmatpush1.msra.mxu0 0.0
    %650 = vmatprep.subr.mxu0 0.0
    %651 = vmatpush1.msra.mxu0 0.0
    %652 = vmatprep.subr.mxu0 0.0
    %653 = vmatpush1.msra.mxu0 0.0
    %654 = vmatprep.subr.mxu0 0.0
    %655 = vmatpush1.msra.mxu0 0.0
    %656 = vmatprep.subr.mxu0 0.0
    %657 = vmatpush1.msra.mxu0 0.0
    %658 = vmatprep.subr.mxu0 0.0
    %659 = vmatpush1.msra.mxu0 0.0
    %660 = vmatprep.subr.mxu0 0.0
    %661 = vmatpush1.msra.mxu0 0.0
    %662 = vmatprep.subr.mxu0 0.0
    %663 = vmatpush1.msra.mxu0 0.0
    %664 = vmatprep.subr.mxu0 0.0
    %665 = vmatpush1.msra.mxu0 0.0
    %666 = vmatprep.subr.mxu0 0.0
    %667 = vmatpush1.msra.mxu0 0.0
    %668 = vmatprep.subr.mxu0 0.0
    %669 = vmatpush1.msra.mxu0 0.0
    %670 = vmatprep.subr.mxu0 0.0
    %671 = vmatpush1.msra.mxu0 0.0
    %672 = vmatprep.subr.mxu0 0.0
    %673 = vmatpush1.msra.mxu0 0.0
    %674 = vmatprep.subr.mxu0 0.0
    %675 = vmatpush1.msra.mxu0 0.0
    %676 = vmatprep.subr.mxu0 0.0
    %677 = vmatpush1.msra.mxu0 0.0
    %678 = vmatprep.subr.mxu0 0.0
    %679 = vmatpush1.msra.mxu0 0.0
    %680 = vmatprep.subr.mxu0 0.0
    %681 = vmatpush1.msra.mxu0 0.0
    %682 = vmatprep.subr.mxu0 0.0
    %683 = vmatpush1.msra.mxu0 0.0
    %684 = vmatprep.subr.mxu0 0.0
    %685 = vmatpush1.msra.mxu0 0.0
    %686 = vmatprep.subr.mxu0 0.0
    %687 = vmatpush1.msra.mxu0 0.0
    %688 = vmatprep.subr.mxu0 0.0
    %689 = vmatpush1.msra.mxu0 0.0
    %690 = vmatprep.subr.mxu0 0.0
    %691 = vmatpush1.msra.mxu0 0.0
    %692 = vmatprep.subr.mxu0 0.0
    %693 = vmatpush1.msra.mxu0 0.0
    %694 = vmatprep.subr.mxu0 0.0
    %695 = vmatpush1.msra.mxu0 0.0
    %696 = vmatprep.mubr.f32.mxu0 0.0
    %697 = vmatmul.mubr.f32.gmra.mrb[0].mxu0 %v630
    %v698 = vpop.f32.mrb[0].mxu0
    %v699 = vadd.f32 %v626, %v698
    %v700 = vpop.f32.mrb[0].mxu0
    %701 = vdwg.mxu0
    %vm702 = vcmp.ge.s32.totalorder %v362, 16
    %vm703 = vcmp.lt.s32.totalorder %v362, 24
    %vm704 = vmand %vm702, %vm703
    %v705 = vsel %vm704, 1, 0
    %v706 = vcvt.s32.f32 %v705
    %v707 = vmul.f32 %v153, %v706
    %v709 = vsel %vm369, %v707, 0
    %711 = vmatprep.subr.mxu0 0.0
    %712 = vmatpush1.xpose.msra.mxu0 %v374
    %713 = vmatprep.subr.mxu0 0.0
    %714 = vmatpush1.xpose.msra.mxu0 %v377
    %715 = vmatprep.subr.mxu0 0.0
    %716 = vmatpush1.xpose.msra.mxu0 0.0
    %717 = vmatprep.subr.mxu0 0.0
    %718 = vmatpush1.xpose.msra.mxu0 0.0
    %719 = vmatprep.subr.mxu0 0.0
    %720 = vmatpush1.xpose.msra.mxu0 0.0
    %721 = vmatprep.subr.mxu0 0.0
    %722 = vmatpush1.xpose.msra.mxu0 0.0
    %723 = vmatprep.subr.mxu0 0.0
    %724 = vmatpush1.xpose.msra.mxu0 0.0
    %725 = vmatprep.subr.mxu0 0.0
    %726 = vmatpush1.xpose.msra.mxu0 0.0
    %727 = vmatprep.subr.mxu0 0.0
    %728 = vmatpush1.xpose.msra.mxu0 0.0
    %729 = vmatprep.subr.mxu0 0.0
    %730 = vmatpush1.xpose.msra.mxu0 0.0
    %731 = vmatprep.subr.mxu0 0.0
    %732 = vmatpush1.xpose.msra.mxu0 0.0
    %733 = vmatprep.subr.mxu0 0.0
    %734 = vmatpush1.xpose.msra.mxu0 0.0
    %735 = vmatprep.subr.mxu0 0.0
    %736 = vmatpush1.xpose.msra.mxu0 0.0
    %737 = vmatprep.subr.mxu0 0.0
    %738 = vmatpush1.xpose.msra.mxu0 0.0
    %739 = vmatprep.subr.mxu0 0.0
    %740 = vmatpush1.xpose.msra.mxu0 0.0
    %741 = vmatprep.subr.mxu0 0.0
    %742 = vmatpush1.xpose.msra.mxu0 0.0
    %743 = vmatprep.subr.mxu0 0.0
    %744 = vmatpush1.xpose.msra.mxu0 0.0
    %745 = vmatprep.subr.mxu0 0.0
    %746 = vmatpush1.xpose.msra.mxu0 0.0
    %747 = vmatprep.subr.mxu0 0.0
    %748 = vmatpush1.xpose.msra.mxu0 0.0
    %749 = vmatprep.subr.mxu0 0.0
    %750 = vmatpush1.xpose.msra.mxu0 0.0
    %751 = vmatprep.subr.mxu0 0.0
    %752 = vmatpush1.xpose.msra.mxu0 0.0
    %753 = vmatprep.subr.mxu0 0.0
    %754 = vmatpush1.xpose.msra.mxu0 0.0
    %755 = vmatprep.subr.mxu0 0.0
    %756 = vmatpush1.xpose.msra.mxu0 0.0
    %757 = vmatprep.subr.mxu0 0.0
    %758 = vmatpush1.xpose.msra.mxu0 0.0
    %759 = vmatprep.subr.mxu0 0.0
    %760 = vmatpush1.xpose.msra.mxu0 0.0
    %761 = vmatprep.subr.mxu0 0.0
    %762 = vmatpush1.xpose.msra.mxu0 0.0
    %763 = vmatprep.subr.mxu0 0.0
    %764 = vmatpush1.xpose.msra.mxu0 0.0
    %765 = vmatprep.subr.mxu0 0.0
    %766 = vmatpush1.xpose.msra.mxu0 0.0
    %767 = vmatprep.subr.mxu0 0.0
    %768 = vmatpush1.xpose.msra.mxu0 0.0
    %769 = vmatprep.subr.mxu0 0.0
    %770 = vmatpush1.xpose.msra.mxu0 0.0
    %771 = vmatprep.subr.mxu0 0.0
    %772 = vmatpush1.xpose.msra.mxu0 0.0
    %773 = vmatprep.subr.mxu0 0.0
    %774 = vmatpush1.xpose.msra.mxu0 0.0
    %775 = vmatprep.mubr.f32.mxu0 0.0
    %776 = vmatmul.mubr.f32.gmra.mrb[0].mxu0 %v709
    %v777 = vpop.f32.mrb[0].mxu0
    %v778 = vadd.f32 0.0, %v777
    %v779 = vpop.f32.mrb[0].mxu0
    %780 = vdwg.mxu0
    %v781 = vmul.f32 %v778, 0.17677669
    %v782 = vsel %vm79, %v781, -inf
    %783 = vmax.xlane.f32.xlu0 %v782
    %v784 = vpop.xlane.xlu0 %783
    %v785 = vsub.f32 %v781, %v784
    %v786 = vmul.f32 %v785, 1.442695
    %v787 = vpow.pop %v786
    %v788 = vsel %vm79, %v787, 0.0
    %789 = vadd.xlane.f32.xlu0 %v788
    %v790 = vpop.xlane.xlu0 %789
    %v791 = vrcp.pop %v790
    %v792 = vmul.f32 %v787, %v791
    %v793 = vmul.f32 %v343, %v706
    %v794 = vmul.f32 %v348, %v706
    %v796 = vsel %vm79, %v792, 0
    %798 = vmatprep.subr.mxu0 0.0
    %799 = vmatpush1.msra.mxu0 %v793
    %800 = vmatprep.subr.mxu0 0.0
    %801 = vmatpush1.msra.mxu0 %v794
    %802 = vmatprep.subr.mxu0 0.0
    %803 = vmatpush1.msra.mxu0 0.0
    %804 = vmatprep.subr.mxu0 0.0
    %805 = vmatpush1.msra.mxu0 0.0
    %806 = vmatprep.subr.mxu0 0.0
    %807 = vmatpush1.msra.mxu0 0.0
    %808 = vmatprep.subr.mxu0 0.0
    %809 = vmatpush1.msra.mxu0 0.0
    %810 = vmatprep.subr.mxu0 0.0
    %811 = vmatpush1.msra.mxu0 0.0
    %812 = vmatprep.subr.mxu0 0.0
    %813 = vmatpush1.msra.mxu0 0.0
    %814 = vmatprep.subr.mxu0 0.0
    %815 = vmatpush1.msra.mxu0 0.0
    %816 = vmatprep.subr.mxu0 0.0
    %817 = vmatpush1.msra.mxu0 0.0
    %818 = vmatprep.subr.mxu0 0.0
    %819 = vmatpush1.msra.mxu0 0.0
    %820 = vmatprep.subr.mxu0 0.0
    %821 = vmatpush1.msra.mxu0 0.0
    %822 = vmatprep.subr.mxu0 0.0
    %823 = vmatpush1.msra.mxu0 0.0
    %824 = vmatprep.subr.mxu0 0.0
    %825 = vmatpush1.msra.mxu0 0.0
    %826 = vmatprep.subr.mxu0 0.0
    %827 = vmatpush1.msra.mxu0 0.0
    %828 = vmatprep.subr.mxu0 0.0
    %829 = vmatpush1.msra.mxu0 0.0
    %830 = vmatprep.subr.mxu0 0.0
    %831 = vmatpush1.msra.mxu0 0.0
    %832 = vmatprep.subr.mxu0 0.0
    %833 = vmatpush1.msra.mxu0 0.0
    %834 = vmatprep.subr.mxu0 0.0
    %835 = vmatpush1.msra.mxu0 0.0
    %836 = vmatprep.subr.mxu0 0.0
    %837 = vmatpush1.msra.mxu0 0.0
    %838 = vmatprep.subr.mxu0 0.0
    %839 = vmatpush1.msra.mxu0 0.0
    %840 = vmatprep.subr.mxu0 0.0
    %841 = vmatpush1.msra.mxu0 0.0
    %842 = vmatprep.subr.mxu0 0.0
    %843 = vmatpush1.msra.mxu0 0.0
    %844 = vmatprep.subr.mxu0 0.0
    %845 = vmatpush1.msra.mxu0 0.0
    %846 = vmatprep.subr.mxu0 0.0
    %847 = vmatpush1.msra.mxu0 0.0
    %848 = vmatprep.subr.mxu0 0.0
    %849 = vmatpush1.msra.mxu0 0.0
    %850 = vmatprep.subr.mxu0 0.0
    %851 = vmatpush1.msra.mxu0 0.0
    %852 = vmatprep.subr.mxu0 0.0
    %853 = vmatpush1.msra.mxu0 0.0
    %854 = vmatprep.subr.mxu0 0.0
    %855 = vmatpush1.msra.mxu0 0.0
    %856 = vmatprep.subr.mxu0 0.0
    %857 = vmatpush1.msra.mxu0 0.0
    %858 = vmatprep.subr.mxu0 0.0
    %859 = vmatpush1.msra.mxu0 0.0
    %860 = vmatprep.subr.mxu0 0.0
    %861 = vmatpush1.msra.mxu0 0.0
    %862 = vmatprep.mubr.f32.mxu0 0.0
    %863 = vmatmul.mubr.f32.gmra.mrb[0].mxu0 %v796
    %v864 = vpop.f32.mrb[0].mxu0
    %v865 = vadd.f32 0.0, %v864
    %v866 = vpop.f32.mrb[0].mxu0
    %867 = vdwg.mxu0
    %v868 = vadd.f32 %v699, %v865
    %vm869 = vcmp.ge.s32.totalorder %v362, 24
    %vm870 = vcmp.lt.s32.totalorder %v362, 32
    %vm871 = vmand %vm869, %vm870
    %v872 = vsel %vm871, 1, 0
    %v873 = vcvt.s32.f32 %v872
    %v874 = vmul.f32 %v153, %v873
    %v876 = vsel %vm369, %v874, 0
    %878 = vmatprep.subr.mxu0 0.0
    %879 = vmatpush1.xpose.msra.mxu0 %v374
    %880 = vmatprep.subr.mxu0 0.0
    %881 = vmatpush1.xpose.msra.mxu0 %v377
    %882 = vmatprep.subr.mxu0 0.0
    %883 = vmatpush1.xpose.msra.mxu0 0.0
    %884 = vmatprep.subr.mxu0 0.0
    %885 = vmatpush1.xpose.msra.mxu0 0.0
    %886 = vmatprep.subr.mxu0 0.0
    %887 = vmatpush1.xpose.msra.mxu0 0.0
    %888 = vmatprep.subr.mxu0 0.0
    %889 = vmatpush1.xpose.msra.mxu0 0.0
    %890 = vmatprep.subr.mxu0 0.0
    %891 = vmatpush1.xpose.msra.mxu0 0.0
    %892 = vmatprep.subr.mxu0 0.0
    %893 = vmatpush1.xpose.msra.mxu0 0.0
    %894 = vmatprep.subr.mxu0 0.0
    %895 = vmatpush1.xpose.msra.mxu0 0.0
    %896 = vmatprep.subr.mxu0 0.0
    %897 = vmatpush1.xpose.msra.mxu0 0.0
    %898 = vmatprep.subr.mxu0 0.0
    %899 = vmatpush1.xpose.msra.mxu0 0.0
    %900 = vmatprep.subr.mxu0 0.0
    %901 = vmatpush1.xpose.msra.mxu0 0.0
    %902 = vmatprep.subr.mxu0 0.0
    %903 = vmatpush1.xpose.msra.mxu0 0.0
    %904 = vmatprep.subr.mxu0 0.0
    %905 = vmatpush1.xpose.msra.mxu0 0.0
    %906 = vmatprep.subr.mxu0 0.0
    %907 = vmatpush1.xpose.msra.mxu0 0.0
    %908 = vmatprep.subr.mxu0 0.0
    %909 = vmatpush1.xpose.msra.mxu0 0.0
    %910 = vmatprep.subr.mxu0 0.0
    %911 = vmatpush1.xpose.msra.mxu0 0.0
    %912 = vmatprep.subr.mxu0 0.0
    %913 = vmatpush1.xpose.msra.mxu0 0.0
    %914 = vmatprep.subr.mxu0 0.0
    %915 = vmatpush1.xpose.msra.mxu0 0.0
    %916 = vmatprep.subr.mxu0 0.0
    %917 = vmatpush1.xpose.msra.mxu0 0.0
    %918 = vmatprep.subr.mxu0 0.0
    %919 = vmatpush1.xpose.msra.mxu0 0.0
    %920 = vmatprep.subr.mxu0 0.0
    %921 = vmatpush1.xpose.msra.mxu0 0.0
    %922 = vmatprep.subr.mxu0 0.0
    %923 = vmatpush1.xpose.msra.mxu0 0.0
    %924 = vmatprep.subr.mxu0 0.0
    %925 = vmatpush1.xpose.msra.mxu0 0.0
    %926 = vmatprep.subr.mxu0 0.0
    %927 = vmatpush1.xpose.msra.mxu0 0.0
    %928 = vmatprep.subr.mxu0 0.0
    %929 = vmatpush1.xpose.msra.mxu0 0.0
    %930 = vmatprep.subr.mxu0 0.0
    %931 = vmatpush1.xpose.msra.mxu0 0.0
    %932 = vmatprep.subr.mxu0 0.0
    %933 = vmatpush1.xpose.msra.mxu0 0.0
    %934 = vmatprep.subr.mxu0 0.0
    %935 = vmatpush1.xpose.msra.mxu0 0.0
    %936 = vmatprep.subr.mxu0 0.0
    %937 = vmatpush1.xpose.msra.mxu0 0.0
    %938 = vmatprep.subr.mxu0 0.0
    %939 = vmatpush1.xpose.msra.mxu0 0.0
    %940 = vmatprep.subr.mxu0 0.0
    %941 = vmatpush1.xpose.msra.mxu0 0.0
    %942 = vmatprep.mubr.f32.mxu0 0.0
    %943 = vmatmul.mubr.f32.gmra.mrb[0].mxu0 %v876
    %v944 = vpop.f32.mrb[0].mxu0
    %v945 = vadd.f32 0.0, %v944
    %v946 = vpop.f32.mrb[0].mxu0
    %947 = vdwg.mxu0
    %v948 = vmul.f32 %v945, 0.17677669
    %v949 = vsel %vm79, %v948, -inf
    %950 = vmax.xlane.f32.xlu0 %v949
    %v951 = vpop.xlane.xlu0 %950
    %v952 = vsub.f32 %v948, %v951
    %v953 = vmul.f32 %v952, 1.442695
    %v954 = vpow.pop %v953
    %v955 = vsel %vm79, %v954, 0.0
    %956 = vadd.xlane.f32.xlu0 %v955
    %v957 = vpop.xlane.xlu0 %956
    %v958 = vrcp.pop %v957
    %v959 = vmul.f32 %v954, %v958
    %v960 = vmul.f32 %v343, %v873
    %v961 = vmul.f32 %v348, %v873
    %v963 = vsel %vm79, %v959, 0
    %965 = vmatprep.subr.mxu0 0.0
    %966 = vmatpush1.msra.mxu0 %v960
    %967 = vmatprep.subr.mxu0 0.0
    %968 = vmatpush1.msra.mxu0 %v961
    %969 = vmatprep.subr.mxu0 0.0
    %970 = vmatpush1.msra.mxu0 0.0
    %971 = vmatprep.subr.mxu0 0.0
    %972 = vmatpush1.msra.mxu0 0.0
    %973 = vmatprep.subr.mxu0 0.0
    %974 = vmatpush1.msra.mxu0 0.0
    %975 = vmatprep.subr.mxu0 0.0
    %976 = vmatpush1.msra.mxu0 0.0
    %977 = vmatprep.subr.mxu0 0.0
    %978 = vmatpush1.msra.mxu0 0.0
    %979 = vmatprep.subr.mxu0 0.0
    %980 = vmatpush1.msra.mxu0 0.0
    %981 = vmatprep.subr.mxu0 0.0
    %982 = vmatpush1.msra.mxu0 0.0
    %983 = vmatprep.subr.mxu0 0.0
    %984 = vmatpush1.msra.mxu0 0.0
    %985 = vmatprep.subr.mxu0 0.0
    %986 = vmatpush1.msra.mxu0 0.0
    %987 = vmatprep.subr.mxu0 0.0
    %988 = vmatpush1.msra.mxu0 0.0
    %989 = vmatprep.subr.mxu0 0.0
    %990 = vmatpush1.msra.mxu0 0.0
    %991 = vmatprep.subr.mxu0 0.0
    %992 = vmatpush1.msra.mxu0 0.0
    %993 = vmatprep.subr.mxu0 0.0
    %994 = vmatpush1.msra.mxu0 0.0
    %995 = vmatprep.subr.mxu0 0.0
    %996 = vmatpush1.msra.mxu0 0.0
    %997 = vmatprep.subr.mxu0 0.0
    %998 = vmatpush1.msra.mxu0 0.0
    %999 = vmatprep.subr.mxu0 0.0
    %1000 = vmatpush1.msra.mxu0 0.0
    %1001 = vmatprep.subr.mxu0 0.0
    %1002 = vmatpush1.msra.mxu0 0.0
    %1003 = vmatprep.subr.mxu0 0.0
    %1004 = vmatpush1.msra.mxu0 0.0
    %1005 = vmatprep.subr.mxu0 0.0
    %1006 = vmatpush1.msra.mxu0 0.0
    %1007 = vmatprep.subr.mxu0 0.0
    %1008 = vmatpush1.msra.mxu0 0.0
    %1009 = vmatprep.subr.mxu0 0.0
    %1010 = vmatpush1.msra.mxu0 0.0
    %1011 = vmatprep.subr.mxu0 0.0
    %1012 = vmatpush1.msra.mxu0 0.0
    %1013 = vmatprep.subr.mxu0 0.0
    %1014 = vmatpush1.msra.mxu0 0.0
    %1015 = vmatprep.subr.mxu0 0.0
    %1016 = vmatpush1.msra.mxu0 0.0
    %1017 = vmatprep.subr.mxu0 0.0
    %1018 = vmatpush1.msra.mxu0 0.0
    %1019 = vmatprep.subr.mxu0 0.0
    %1020 = vmatpush1.msra.mxu0 0.0
    %1021 = vmatprep.subr.mxu0 0.0
    %1022 = vmatpush1.msra.mxu0 0.0
    %1023 = vmatprep.subr.mxu0 0.0
    %1024 = vmatpush1.msra.mxu0 0.0
    %1025 = vmatprep.subr.mxu0 0.0
    %1026 = vmatpush1.msra.mxu0 0.0
    %1027 = vmatprep.subr.mxu0 0.0
    %1028 = vmatpush1.msra.mxu0 0.0
    %1029 = vmatprep.mubr.f32.mxu0 0.0
    %1030 = vmatmul.mubr.f32.gmra.mrb[0].mxu0 %v963
    %v1031 = vpop.f32.mrb[0].mxu0
    %v1032 = vadd.f32 0.0, %v1031
    %v1033 = vpop.f32.mrb[0].mxu0
    %1034 = vdwg.mxu0
    %v1035 = vadd.f32 %v868, %v1032
    %v1036 = vmul.f32 %v158, %v367
    %v1038 = vsel %vm369, %v1036, 0
    %v1041 = vsel %vm369, %v259, 0
    %v1044 = vsel %vm369, %v264, 0
    %1046 = vmatprep.subr.mxu0 0.0
    %1047 = vmatpush1.xpose.msra.mxu0 %v1041
    %1048 = vmatprep.subr.mxu0 0.0
    %1049 = vmatpush1.xpose.msra.mxu0 %v1044
    %1050 = vmatprep.subr.mxu0 0.0
    %1051 = vmatpush1.xpose.msra.mxu0 0.0
    %1052 = vmatprep.subr.mxu0 0.0
    %1053 = vmatpush1.xpose.msra.mxu0 0.0
    %1054 = vmatprep.subr.mxu0 0.0
    %1055 = vmatpush1.xpose.msra.mxu0 0.0
    %1056 = vmatprep.subr.mxu0 0.0
    %1057 = vmatpush1.xpose.msra.mxu0 0.0
    %1058 = vmatprep.subr.mxu0 0.0
    %1059 = vmatpush1.xpose.msra.mxu0 0.0
    %1060 = vmatprep.subr.mxu0 0.0
    %1061 = vmatpush1.xpose.msra.mxu0 0.0
    %1062 = vmatprep.subr.mxu0 0.0
    %1063 = vmatpush1.xpose.msra.mxu0 0.0
    %1064 = vmatprep.subr.mxu0 0.0
    %1065 = vmatpush1.xpose.msra.mxu0 0.0
    %1066 = vmatprep.subr.mxu0 0.0
    %1067 = vmatpush1.xpose.msra.mxu0 0.0
    %1068 = vmatprep.subr.mxu0 0.0
    %1069 = vmatpush1.xpose.msra.mxu0 0.0
    %1070 = vmatprep.subr.mxu0 0.0
    %1071 = vmatpush1.xpose.msra.mxu0 0.0
    %1072 = vmatprep.subr.mxu0 0.0
    %1073 = vmatpush1.xpose.msra.mxu0 0.0
    %1074 = vmatprep.subr.mxu0 0.0
    %1075 = vmatpush1.xpose.msra.mxu0 0.0
    %1076 = vmatprep.subr.mxu0 0.0
    %1077 = vmatpush1.xpose.msra.mxu0 0.0
    %1078 = vmatprep.subr.mxu0 0.0
    %1079 = vmatpush1.xpose.msra.mxu0 0.0
    %1080 = vmatprep.subr.mxu0 0.0
    %1081 = vmatpush1.xpose.msra.mxu0 0.0
    %1082 = vmatprep.subr.mxu0 0.0
    %1083 = vmatpush1.xpose.msra.mxu0 0.0
    %1084 = vmatprep.subr.mxu0 0.0
    %1085 = vmatpush1.xpose.msra.mxu0 0.0
    %1086 = vmatprep.subr.mxu0 0.0
    %1087 = vmatpush1.xpose.msra.mxu0 0.0
    %1088 = vmatprep.subr.mxu0 0.0
    %1089 = vmatpush1.xpose.msra.mxu0 0.0
    %1090 = vmatprep.subr.mxu0 0.0
    %1091 = vmatpush1.xpose.msra.mxu0 0.0
    %1092 = vmatprep.subr.mxu0 0.0
    %1093 = vmatpush1.xpose.msra.mxu0 0.0
    %1094 = vmatprep.subr.mxu0 0.0
    %1095 = vmatpush1.xpose.msra.mxu0 0.0
    %1096 = vmatprep.subr.mxu0 0.0
    %1097 = vmatpush1.xpose.msra.mxu0 0.0
    %1098 = vmatprep.subr.mxu0 0.0
    %1099 = vmatpush1.xpose.msra.mxu0 0.0
    %1100 = vmatprep.subr.mxu0 0.0
    %1101 = vmatpush1.xpose.msra.mxu0 0.0
    %1102 = vmatprep.subr.mxu0 0.0
    %1103 = vmatpush1.xpose.msra.mxu0 0.0
    %1104 = vmatprep.subr.mxu0 0.0
    %1105 = vmatpush1.xpose.msra.mxu0 0.0
    %1106 = vmatprep.subr.mxu0 0.0
    %1107 = vmatpush1.xpose.msra.mxu0 0.0
    %1108 = vmatprep.subr.mxu0 0.0
    %1109 = vmatpush1.xpose.msra.mxu0 0.0
    %1110 = vmatprep.mubr.f32.mxu0 0.0
    %1111 = vmatmul.mubr.f32.gmra.mrb[0].mxu0 %v1038
    %v1112 = vpop.f32.mrb[0].mxu0
    %v1113 = vadd.f32 0.0, %v1112
    %v1114 = vpop.f32.mrb[0].mxu0
    %1115 = vdwg.mxu0
    %v1116 = vmul.f32 %v1113, 0.17677669
    %v1117 = vsel %vm79, %v1116, -inf
    %1118 = vmax.xlane.f32.xlu0 %v1117
    %v1119 = vpop.xlane.xlu0 %1118
    %v1120 = vsub.f32 %v1116, %v1119
    %v1121 = vmul.f32 %v1120, 1.442695
    %v1122 = vpow.pop %v1121
    %v1123 = vsel %vm79, %v1122, 0.0
    %1124 = vadd.xlane.f32.xlu0 %v1123
    %v1125 = vpop.xlane.xlu0 %1124
    %v1126 = vrcp.pop %v1125
    %v1127 = vmul.f32 %v1122, %v1126
    %v1128 = vmul.f32 %v353, %v367
    %v1129 = vmul.f32 %v358, %v367
    %v1130 = vmul.f32 %v158, %v467
    %v1132 = vsel %vm369, %v1130, 0
    %1134 = vmatprep.subr.mxu0 0.0
    %1135 = vmatpush1.xpose.msra.mxu0 %v1041
    %1136 = vmatprep.subr.mxu0 0.0
    %1137 = vmatpush1.xpose.msra.mxu0 %v1044
    %1138 = vmatprep.subr.mxu0 0.0
    %1139 = vmatpush1.xpose.msra.mxu0 0.0
    %1140 = vmatprep.subr.mxu0 0.0
    %1141 = vmatpush1.xpose.msra.mxu0 0.0
    %1142 = vmatprep.subr.mxu0 0.0
    %1143 = vmatpush1.xpose.msra.mxu0 0.0
    %1144 = vmatprep.subr.mxu0 0.0
    %1145 = vmatpush1.xpose.msra.mxu0 0.0
    %1146 = vmatprep.subr.mxu0 0.0
    %1147 = vmatpush1.xpose.msra.mxu0 0.0
    %1148 = vmatprep.subr.mxu0 0.0
    %1149 = vmatpush1.xpose.msra.mxu0 0.0
    %1150 = vmatprep.subr.mxu0 0.0
    %1151 = vmatpush1.xpose.msra.mxu0 0.0
    %1152 = vmatprep.subr.mxu0 0.0
    %1153 = vmatpush1.xpose.msra.mxu0 0.0
    %1154 = vmatprep.subr.mxu0 0.0
    %1155 = vmatpush1.xpose.msra.mxu0 0.0
    %1156 = vmatprep.subr.mxu0 0.0
    %1157 = vmatpush1.xpose.msra.mxu0 0.0
    %1158 = vmatprep.subr.mxu0 0.0
    %1159 = vmatpush1.xpose.msra.mxu0 0.0
    %1160 = vmatprep.subr.mxu0 0.0
    %1161 = vmatpush1.xpose.msra.mxu0 0.0
    %1162 = vmatprep.subr.mxu0 0.0
    %1163 = vmatpush1.xpose.msra.mxu0 0.0
    %1164 = vmatprep.subr.mxu0 0.0
    %1165 = vmatpush1.xpose.msra.mxu0 0.0
    %1166 = vmatprep.subr.mxu0 0.0
    %1167 = vmatpush1.xpose.msra.mxu0 0.0
    %1168 = vmatprep.subr.mxu0 0.0
    %1169 = vmatpush1.xpose.msra.mxu0 0.0
    %1170 = vmatprep.subr.mxu0 0.0
    %1171 = vmatpush1.xpose.msra.mxu0 0.0
    %1172 = vmatprep.subr.mxu0 0.0
    %1173 = vmatpush1.xpose.msra.mxu0 0.0
    %1174 = vmatprep.subr.mxu0 0.0
    %1175 = vmatpush1.xpose.msra.mxu0 0.0
    %1176 = vmatprep.subr.mxu0 0.0
    %1177 = vmatpush1.xpose.msra.mxu0 0.0
    %1178 = vmatprep.subr.mxu0 0.0
    %1179 = vmatpush1.xpose.msra.mxu0 0.0
    %1180 = vmatprep.subr.mxu0 0.0
    %1181 = vmatpush1.xpose.msra.mxu0 0.0
    %1182 = vmatprep.subr.mxu0 0.0
    %1183 = vmatpush1.xpose.msra.mxu0 0.0
    %1184 = vmatprep.subr.mxu0 0.0
    %1185 = vmatpush1.xpose.msra.mxu0 0.0
    %1186 = vmatprep.subr.mxu0 0.0
    %1187 = vmatpush1.xpose.msra.mxu0 0.0
    %1188 = vmatprep.subr.mxu0 0.0
    %1189 = vmatpush1.xpose.msra.mxu0 0.0
    %1190 = vmatprep.subr.mxu0 0.0
    %1191 = vmatpush1.xpose.msra.mxu0 0.0
    %1192 = vmatprep.subr.mxu0 0.0
    %1193 = vmatpush1.xpose.msra.mxu0 0.0
    %1194 = vmatprep.subr.mxu0 0.0
    %1195 = vmatpush1.xpose.msra.mxu0 0.0
    %1196 = vmatprep.subr.mxu0 0.0
    %1197 = vmatpush1.xpose.msra.mxu0 0.0
    %1198 = vmatprep.mubr.f32.mxu0 0.0
    %1199 = vmatmul.mubr.f32.gmra.mrb[0].mxu0 %v1132
    %v1200 = vpop.f32.mrb[0].mxu0
    %v1201 = vadd.f32 0.0, %v1200
    %v1202 = vpop.f32.mrb[0].mxu0
    %1203 = vdwg.mxu0
    %v1204 = vmul.f32 %v1201, 0.17677669
    %v1205 = vsel %vm79, %v1204, -inf
    %1206 = vmax.xlane.f32.xlu0 %v1205
    %v1207 = vpop.xlane.xlu0 %1206
    %v1208 = vsub.f32 %v1204, %v1207
    %v1209 = vmul.f32 %v1208, 1.442695
    %v1210 = vpow.pop %v1209
    %v1211 = vsel %vm79, %v1210, 0.0
    %1212 = vadd.xlane.f32.xlu0 %v1211
    %v1213 = vpop.xlane.xlu0 %1212
    %v1214 = vrcp.pop %v1213
    %v1215 = vmul.f32 %v1210, %v1214
    %v1216 = vmul.f32 %v353, %v467
    %v1217 = vmul.f32 %v358, %v467
    %v1219 = vsel %vm79, %v1215, 0
    %1221 = vmatprep.subr.mxu0 0.0
    %1222 = vmatpush1.msra.mxu0 %v1216
    %1223 = vmatprep.subr.mxu0 0.0
    %1224 = vmatpush1.msra.mxu0 %v1217
    %1225 = vmatprep.subr.mxu0 0.0
    %1226 = vmatpush1.msra.mxu0 0.0
    %1227 = vmatprep.subr.mxu0 0.0
    %1228 = vmatpush1.msra.mxu0 0.0
    %1229 = vmatprep.subr.mxu0 0.0
    %1230 = vmatpush1.msra.mxu0 0.0
    %1231 = vmatprep.subr.mxu0 0.0
    %1232 = vmatpush1.msra.mxu0 0.0
    %1233 = vmatprep.subr.mxu0 0.0
    %1234 = vmatpush1.msra.mxu0 0.0
    %1235 = vmatprep.subr.mxu0 0.0
    %1236 = vmatpush1.msra.mxu0 0.0
    %1237 = vmatprep.subr.mxu0 0.0
    %1238 = vmatpush1.msra.mxu0 0.0
    %1239 = vmatprep.subr.mxu0 0.0
    %1240 = vmatpush1.msra.mxu0 0.0
    %1241 = vmatprep.subr.mxu0 0.0
    %1242 = vmatpush1.msra.mxu0 0.0
    %1243 = vmatprep.subr.mxu0 0.0
    %1244 = vmatpush1.msra.mxu0 0.0
    %1245 = vmatprep.subr.mxu0 0.0
    %1246 = vmatpush1.msra.mxu0 0.0
    %1247 = vmatprep.subr.mxu0 0.0
    %1248 = vmatpush1.msra.mxu0 0.0
    %1249 = vmatprep.subr.mxu0 0.0
    %1250 = vmatpush1.msra.mxu0 0.0
    %1251 = vmatprep.subr.mxu0 0.0
    %1252 = vmatpush1.msra.mxu0 0.0
    %1253 = vmatprep.subr.mxu0 0.0
    %1254 = vmatpush1.msra.mxu0 0.0
    %1255 = vmatprep.subr.mxu0 0.0
    %1256 = vmatpush1.msra.mxu0 0.0
    %1257 = vmatprep.subr.mxu0 0.0
    %1258 = vmatpush1.msra.mxu0 0.0
    %1259 = vmatprep.subr.mxu0 0.0
    %1260 = vmatpush1.msra.mxu0 0.0
    %1261 = vmatprep.subr.mxu0 0.0
    %1262 = vmatpush1.msra.mxu0 0.0
    %1263 = vmatprep.subr.mxu0 0.0
    %1264 = vmatpush1.msra.mxu0 0.0
    %1265 = vmatprep.subr.mxu0 0.0
    %1266 = vmatpush1.msra.mxu0 0.0
    %1267 = vmatprep.subr.mxu0 0.0
    %1268 = vmatpush1.msra.mxu0 0.0
    %1269 = vmatprep.subr.mxu0 0.0
    %1270 = vmatpush1.msra.mxu0 0.0
    %1271 = vmatprep.subr.mxu0 0.0
    %1272 = vmatpush1.msra.mxu0 0.0
    %1273 = vmatprep.subr.mxu0 0.0
    %1274 = vmatpush1.msra.mxu0 0.0
    %1275 = vmatprep.subr.mxu0 0.0
    %1276 = vmatpush1.msra.mxu0 0.0
    %1277 = vmatprep.subr.mxu0 0.0
    %1278 = vmatpush1.msra.mxu0 0.0
    %1279 = vmatprep.subr.mxu0 0.0
    %1280 = vmatpush1.msra.mxu0 0.0
    %1281 = vmatprep.subr.mxu0 0.0
    %1282 = vmatpush1.msra.mxu0 0.0
    %1283 = vmatprep.subr.mxu0 0.0
    %1284 = vmatpush1.msra.mxu0 0.0
    %1285 = vmatprep.mubr.f32.mxu0 0.0
    %1286 = vmatmul.mubr.f32.gmra.mrb[0].mxu0 %v1219
    %v1287 = vpop.f32.mrb[0].mxu0
    %v1288 = vadd.f32 0.0, %v1287
    %v1289 = vpop.f32.mrb[0].mxu0
    %1290 = vdwg.mxu0
    %v1292 = vsel %vm79, %v1127, 0
    %1294 = vmatprep.subr.mxu0 0.0
    %1295 = vmatpush1.msra.mxu0 %v1128
    %1296 = vmatprep.subr.mxu0 0.0
    %1297 = vmatpush1.msra.mxu0 %v1129
    %1298 = vmatprep.subr.mxu0 0.0
    %1299 = vmatpush1.msra.mxu0 0.0
    %1300 = vmatprep.subr.mxu0 0.0
    %1301 = vmatpush1.msra.mxu0 0.0
    %1302 = vmatprep.subr.mxu0 0.0
    %1303 = vmatpush1.msra.mxu0 0.0
    %1304 = vmatprep.subr.mxu0 0.0
    %1305 = vmatpush1.msra.mxu0 0.0
    %1306 = vmatprep.subr.mxu0 0.0
    %1307 = vmatpush1.msra.mxu0 0.0
    %1308 = vmatprep.subr.mxu0 0.0
    %1309 = vmatpush1.msra.mxu0 0.0
    %1310 = vmatprep.subr.mxu0 0.0
    %1311 = vmatpush1.msra.mxu0 0.0
    %1312 = vmatprep.subr.mxu0 0.0
    %1313 = vmatpush1.msra.mxu0 0.0
    %1314 = vmatprep.subr.mxu0 0.0
    %1315 = vmatpush1.msra.mxu0 0.0
    %1316 = vmatprep.subr.mxu0 0.0
    %1317 = vmatpush1.msra.mxu0 0.0
    %1318 = vmatprep.subr.mxu0 0.0
    %1319 = vmatpush1.msra.mxu0 0.0
    %1320 = vmatprep.subr.mxu0 0.0
    %1321 = vmatpush1.msra.mxu0 0.0
    %1322 = vmatprep.subr.mxu0 0.0
    %1323 = vmatpush1.msra.mxu0 0.0
    %1324 = vmatprep.subr.mxu0 0.0
    %1325 = vmatpush1.msra.mxu0 0.0
    %1326 = vmatprep.subr.mxu0 0.0
    %1327 = vmatpush1.msra.mxu0 0.0
    %1328 = vmatprep.subr.mxu0 0.0
    %1329 = vmatpush1.msra.mxu0 0.0
    %1330 = vmatprep.subr.mxu0 0.0
    %1331 = vmatpush1.msra.mxu0 0.0
    %1332 = vmatprep.subr.mxu0 0.0
    %1333 = vmatpush1.msra.mxu0 0.0
    %1334 = vmatprep.subr.mxu0 0.0
    %1335 = vmatpush1.msra.mxu0 0.0
    %1336 = vmatprep.subr.mxu0 0.0
    %1337 = vmatpush1.msra.mxu0 0.0
    %1338 = vmatprep.subr.mxu0 0.0
    %1339 = vmatpush1.msra.mxu0 0.0
    %1340 = vmatprep.subr.mxu0 0.0
    %1341 = vmatpush1.msra.mxu0 0.0
    %1342 = vmatprep.subr.mxu0 0.0
    %1343 = vmatpush1.msra.mxu0 0.0
    %1344 = vmatprep.subr.mxu0 0.0
    %1345 = vmatpush1.msra.mxu0 0.0
    %1346 = vmatprep.subr.mxu0 0.0
    %1347 = vmatpush1.msra.mxu0 0.0
    %1348 = vmatprep.subr.mxu0 0.0
    %1349 = vmatpush1.msra.mxu0 0.0
    %1350 = vmatprep.subr.mxu0 0.0
    %1351 = vmatpush1.msra.mxu0 0.0
    %1352 = vmatprep.subr.mxu0 0.0
    %1353 = vmatpush1.msra.mxu0 0.0
    %1354 = vmatprep.subr.mxu0 0.0
    %1355 = vmatpush1.msra.mxu0 0.0
    %1356 = vmatprep.subr.mxu0 0.0
    %1357 = vmatpush1.msra.mxu0 0.0
    %1358 = vmatprep.mubr.f32.mxu0 0.0
    %1359 = vmatmul.mubr.f32.gmra.mrb[0].mxu0 %v1292
    %v1360 = vpop.f32.mrb[0].mxu0
    %v1361 = vadd.f32 %v1288, %v1360
    %v1362 = vpop.f32.mrb[0].mxu0
    %1363 = vdwg.mxu0
    %v1364 = vmul.f32 %v158, %v706
    %v1366 = vsel %vm369, %v1364, 0
    %1368 = vmatprep.subr.mxu0 0.0
    %1369 = vmatpush1.xpose.msra.mxu0 %v1041
    %1370 = vmatprep.subr.mxu0 0.0
    %1371 = vmatpush1.xpose.msra.mxu0 %v1044
    %1372 = vmatprep.subr.mxu0 0.0
    %1373 = vmatpush1.xpose.msra.mxu0 0.0
    %1374 = vmatprep.subr.mxu0 0.0
    %1375 = vmatpush1.xpose.msra.mxu0 0.0
    %1376 = vmatprep.subr.mxu0 0.0
    %1377 = vmatpush1.xpose.msra.mxu0 0.0
    %1378 = vmatprep.subr.mxu0 0.0
    %1379 = vmatpush1.xpose.msra.mxu0 0.0
    %1380 = vmatprep.subr.mxu0 0.0
    %1381 = vmatpush1.xpose.msra.mxu0 0.0
    %1382 = vmatprep.subr.mxu0 0.0
    %1383 = vmatpush1.xpose.msra.mxu0 0.0
    %1384 = vmatprep.subr.mxu0 0.0
    %1385 = vmatpush1.xpose.msra.mxu0 0.0
    %1386 = vmatprep.subr.mxu0 0.0
    %1387 = vmatpush1.xpose.msra.mxu0 0.0
    %1388 = vmatprep.subr.mxu0 0.0
    %1389 = vmatpush1.xpose.msra.mxu0 0.0
    %1390 = vmatprep.subr.mxu0 0.0
    %1391 = vmatpush1.xpose.msra.mxu0 0.0
    %1392 = vmatprep.subr.mxu0 0.0
    %1393 = vmatpush1.xpose.msra.mxu0 0.0
    %1394 = vmatprep.subr.mxu0 0.0
    %1395 = vmatpush1.xpose.msra.mxu0 0.0
    %1396 = vmatprep.subr.mxu0 0.0
    %1397 = vmatpush1.xpose.msra.mxu0 0.0
    %1398 = vmatprep.subr.mxu0 0.0
    %1399 = vmatpush1.xpose.msra.mxu0 0.0
    %1400 = vmatprep.subr.mxu0 0.0
    %1401 = vmatpush1.xpose.msra.mxu0 0.0
    %1402 = vmatprep.subr.mxu0 0.0
    %1403 = vmatpush1.xpose.msra.mxu0 0.0
    %1404 = vmatprep.subr.mxu0 0.0
    %1405 = vmatpush1.xpose.msra.mxu0 0.0
    %1406 = vmatprep.subr.mxu0 0.0
    %1407 = vmatpush1.xpose.msra.mxu0 0.0
    %1408 = vmatprep.subr.mxu0 0.0
    %1409 = vmatpush1.xpose.msra.mxu0 0.0
    %1410 = vmatprep.subr.mxu0 0.0
    %1411 = vmatpush1.xpose.msra.mxu0 0.0
    %1412 = vmatprep.subr.mxu0 0.0
    %1413 = vmatpush1.xpose.msra.mxu0 0.0
    %1414 = vmatprep.subr.mxu0 0.0
    %1415 = vmatpush1.xpose.msra.mxu0 0.0
    %1416 = vmatprep.subr.mxu0 0.0
    %1417 = vmatpush1.xpose.msra.mxu0 0.0
    %1418 = vmatprep.subr.mxu0 0.0
    %1419 = vmatpush1.xpose.msra.mxu0 0.0
    %1420 = vmatprep.subr.mxu0 0.0
    %1421 = vmatpush1.xpose.msra.mxu0 0.0
    %1422 = vmatprep.subr.mxu0 0.0
    %1423 = vmatpush1.xpose.msra.mxu0 0.0
    %1424 = vmatprep.subr.mxu0 0.0
    %1425 = vmatpush1.xpose.msra.mxu0 0.0
    %1426 = vmatprep.subr.mxu0 0.0
    %1427 = vmatpush1.xpose.msra.mxu0 0.0
    %1428 = vmatprep.subr.mxu0 0.0
    %1429 = vmatpush1.xpose.msra.mxu0 0.0
    %1430 = vmatprep.subr.mxu0 0.0
    %1431 = vmatpush1.xpose.msra.mxu0 0.0
    %1432 = vmatprep.mubr.f32.mxu0 0.0
    %1433 = vmatmul.mubr.f32.gmra.mrb[0].mxu0 %v1366
    %v1434 = vpop.f32.mrb[0].mxu0
    %v1435 = vadd.f32 0.0, %v1434
    %v1436 = vpop.f32.mrb[0].mxu0
    %1437 = vdwg.mxu0
    %v1438 = vmul.f32 %v1435, 0.17677669
    %v1439 = vsel %vm79, %v1438, -inf
    %1440 = vmax.xlane.f32.xlu0 %v1439
    %v1441 = vpop.xlane.xlu0 %1440
    %v1442 = vsub.f32 %v1438, %v1441
    %v1443 = vmul.f32 %v1442, 1.442695
    %v1444 = vpow.pop %v1443
    %v1445 = vsel %vm79, %v1444, 0.0
    %1446 = vadd.xlane.f32.xlu0 %v1445
    %v1447 = vpop.xlane.xlu0 %1446
    %v1448 = vrcp.pop %v1447
    %v1449 = vmul.f32 %v1444, %v1448
    %v1450 = vmul.f32 %v353, %v706
    %v1451 = vmul.f32 %v358, %v706
    %v1453 = vsel %vm79, %v1449, 0
    %1455 = vmatprep.subr.mxu0 0.0
    %1456 = vmatpush1.msra.mxu0 %v1450
    %1457 = vmatprep.subr.mxu0 0.0
    %1458 = vmatpush1.msra.mxu0 %v1451
    %1459 = vmatprep.subr.mxu0 0.0
    %1460 = vmatpush1.msra.mxu0 0.0
    %1461 = vmatprep.subr.mxu0 0.0
    %1462 = vmatpush1.msra.mxu0 0.0
    %1463 = vmatprep.subr.mxu0 0.0
    %1464 = vmatpush1.msra.mxu0 0.0
    %1465 = vmatprep.subr.mxu0 0.0
    %1466 = vmatpush1.msra.mxu0 0.0
    %1467 = vmatprep.subr.mxu0 0.0
    %1468 = vmatpush1.msra.mxu0 0.0
    %1469 = vmatprep.subr.mxu0 0.0
    %1470 = vmatpush1.msra.mxu0 0.0
    %1471 = vmatprep.subr.mxu0 0.0
    %1472 = vmatpush1.msra.mxu0 0.0
    %1473 = vmatprep.subr.mxu0 0.0
    %1474 = vmatpush1.msra.mxu0 0.0
    %1475 = vmatprep.subr.mxu0 0.0
    %1476 = vmatpush1.msra.mxu0 0.0
    %1477 = vmatprep.subr.mxu0 0.0
    %1478 = vmatpush1.msra.mxu0 0.0
    %1479 = vmatprep.subr.mxu0 0.0
    %1480 = vmatpush1.msra.mxu0 0.0
    %1481 = vmatprep.subr.mxu0 0.0
    %1482 = vmatpush1.msra.mxu0 0.0
    %1483 = vmatprep.subr.mxu0 0.0
    %1484 = vmatpush1.msra.mxu0 0.0
    %1485 = vmatprep.subr.mxu0 0.0
    %1486 = vmatpush1.msra.mxu0 0.0
    %1487 = vmatprep.subr.mxu0 0.0
    %1488 = vmatpush1.msra.mxu0 0.0
    %1489 = vmatprep.subr.mxu0 0.0
    %1490 = vmatpush1.msra.mxu0 0.0
    %1491 = vmatprep.subr.mxu0 0.0
    %1492 = vmatpush1.msra.mxu0 0.0
    %1493 = vmatprep.subr.mxu0 0.0
    %1494 = vmatpush1.msra.mxu0 0.0
    %1495 = vmatprep.subr.mxu0 0.0
    %1496 = vmatpush1.msra.mxu0 0.0
    %1497 = vmatprep.subr.mxu0 0.0
    %1498 = vmatpush1.msra.mxu0 0.0
    %1499 = vmatprep.subr.mxu0 0.0
    %1500 = vmatpush1.msra.mxu0 0.0
    %1501 = vmatprep.subr.mxu0 0.0
    %1502 = vmatpush1.msra.mxu0 0.0
    %1503 = vmatprep.subr.mxu0 0.0
    %1504 = vmatpush1.msra.mxu0 0.0
    %1505 = vmatprep.subr.mxu0 0.0
    %1506 = vmatpush1.msra.mxu0 0.0
    %1507 = vmatprep.subr.mxu0 0.0
    %1508 = vmatpush1.msra.mxu0 0.0
    %1509 = vmatprep.subr.mxu0 0.0
    %1510 = vmatpush1.msra.mxu0 0.0
    %1511 = vmatprep.subr.mxu0 0.0
    %1512 = vmatpush1.msra.mxu0 0.0
    %1513 = vmatprep.subr.mxu0 0.0
    %1514 = vmatpush1.msra.mxu0 0.0
    %1515 = vmatprep.subr.mxu0 0.0
    %1516 = vmatpush1.msra.mxu0 0.0
    %1517 = vmatprep.subr.mxu0 0.0
    %1518 = vmatpush1.msra.mxu0 0.0
    %1519 = vmatprep.mubr.f32.mxu0 0.0
    %1520 = vmatmul.mubr.f32.gmra.mrb[0].mxu0 %v1453
    %v1521 = vpop.f32.mrb[0].mxu0
    %v1522 = vadd.f32 0.0, %v1521
    %v1523 = vpop.f32.mrb[0].mxu0
    %1524 = vdwg.mxu0
    %v1525 = vadd.f32 %v1361, %v1522
    %v1526 = vmul.f32 %v158, %v873
    %v1528 = vsel %vm369, %v1526, 0
    %1530 = vmatprep.subr.mxu0 0.0
    %1531 = vmatpush1.xpose.msra.mxu0 %v1041
    %1532 = vmatprep.subr.mxu0 0.0
    %1533 = vmatpush1.xpose.msra.mxu0 %v1044
    %1534 = vmatprep.subr.mxu0 0.0
    %1535 = vmatpush1.xpose.msra.mxu0 0.0
    %1536 = vmatprep.subr.mxu0 0.0
    %1537 = vmatpush1.xpose.msra.mxu0 0.0
    %1538 = vmatprep.subr.mxu0 0.0
    %1539 = vmatpush1.xpose.msra.mxu0 0.0
    %1540 = vmatprep.subr.mxu0 0.0
    %1541 = vmatpush1.xpose.msra.mxu0 0.0
    %1542 = vmatprep.subr.mxu0 0.0
    %1543 = vmatpush1.xpose.msra.mxu0 0.0
    %1544 = vmatprep.subr.mxu0 0.0
    %1545 = vmatpush1.xpose.msra.mxu0 0.0
    %1546 = vmatprep.subr.mxu0 0.0
    %1547 = vmatpush1.xpose.msra.mxu0 0.0
    %1548 = vmatprep.subr.mxu0 0.0
    %1549 = vmatpush1.xpose.msra.mxu0 0.0
    %1550 = vmatprep.subr.mxu0 0.0
    %1551 = vmatpush1.xpose.msra.mxu0 0.0
    %1552 = vmatprep.subr.mxu0 0.0
    %1553 = vmatpush1.xpose.msra.mxu0 0.0
    %1554 = vmatprep.subr.mxu0 0.0
    %1555 = vmatpush1.xpose.msra.mxu0 0.0
    %1556 = vmatprep.subr.mxu0 0.0
    %1557 = vmatpush1.xpose.msra.mxu0 0.0
    %1558 = vmatprep.subr.mxu0 0.0
    %1559 = vmatpush1.xpose.msra.mxu0 0.0
    %1560 = vmatprep.subr.mxu0 0.0
    %1561 = vmatpush1.xpose.msra.mxu0 0.0
    %1562 = vmatprep.subr.mxu0 0.0
    %1563 = vmatpush1.xpose.msra.mxu0 0.0
    %1564 = vmatprep.subr.mxu0 0.0
    %1565 = vmatpush1.xpose.msra.mxu0 0.0
    %1566 = vmatprep.subr.mxu0 0.0
    %1567 = vmatpush1.xpose.msra.mxu0 0.0
    %1568 = vmatprep.subr.mxu0 0.0
    %1569 = vmatpush1.xpose.msra.mxu0 0.0
    %1570 = vmatprep.subr.mxu0 0.0
    %1571 = vmatpush1.xpose.msra.mxu0 0.0
    %1572 = vmatprep.subr.mxu0 0.0
    %1573 = vmatpush1.xpose.msra.mxu0 0.0
    %1574 = vmatprep.subr.mxu0 0.0
    %1575 = vmatpush1.xpose.msra.mxu0 0.0
    %1576 = vmatprep.subr.mxu0 0.0
    %1577 = vmatpush1.xpose.msra.mxu0 0.0
    %1578 = vmatprep.subr.mxu0 0.0
    %1579 = vmatpush1.xpose.msra.mxu0 0.0
    %1580 = vmatprep.subr.mxu0 0.0
    %1581 = vmatpush1.xpose.msra.mxu0 0.0
    %1582 = vmatprep.subr.mxu0 0.0
    %1583 = vmatpush1.xpose.msra.mxu0 0.0
    %1584 = vmatprep.subr.mxu0 0.0
    %1585 = vmatpush1.xpose.msra.mxu0 0.0
    %1586 = vmatprep.subr.mxu0 0.0
    %1587 = vmatpush1.xpose.msra.mxu0 0.0
    %1588 = vmatprep.subr.mxu0 0.0
    %1589 = vmatpush1.xpose.msra.mxu0 0.0
    %1590 = vmatprep.subr.mxu0 0.0
    %1591 = vmatpush1.xpose.msra.mxu0 0.0
    %1592 = vmatprep.subr.mxu0 0.0
    %1593 = vmatpush1.xpose.msra.mxu0 0.0
    %1594 = vmatprep.mubr.f32.mxu0 0.0
    %1595 = vmatmul.mubr.f32.gmra.mrb[0].mxu0 %v1528
    %v1596 = vpop.f32.mrb[0].mxu0
    %v1597 = vadd.f32 0.0, %v1596
    %v1598 = vpop.f32.mrb[0].mxu0
    %1599 = vdwg.mxu0
    %v1600 = vmul.f32 %v1597, 0.17677669
    %v1601 = vsel %vm79, %v1600, -inf
    %1602 = vmax.xlane.f32.xlu0 %v1601
    %v1603 = vpop.xlane.xlu0 %1602
    %v1604 = vsub.f32 %v1600, %v1603
    %v1605 = vmul.f32 %v1604, 1.442695
    %v1606 = vpow.pop %v1605
    %v1607 = vsel %vm79, %v1606, 0.0
    %1608 = vadd.xlane.f32.xlu0 %v1607
    %v1609 = vpop.xlane.xlu0 %1608
    %v1610 = vrcp.pop %v1609
    %v1611 = vmul.f32 %v1606, %v1610
    %v1612 = vmul.f32 %v353, %v873
    %v1613 = vmul.f32 %v358, %v873
    %v1615 = vsel %vm79, %v1611, 0
    %1617 = vmatprep.subr.mxu0 0.0
    %1618 = vmatpush1.msra.mxu0 %v1612
    %1619 = vmatprep.subr.mxu0 0.0
    %1620 = vmatpush1.msra.mxu0 %v1613
    %1621 = vmatprep.subr.mxu0 0.0
    %1622 = vmatpush1.msra.mxu0 0.0
    %1623 = vmatprep.subr.mxu0 0.0
    %1624 = vmatpush1.msra.mxu0 0.0
    %1625 = vmatprep.subr.mxu0 0.0
    %1626 = vmatpush1.msra.mxu0 0.0
    %1627 = vmatprep.subr.mxu0 0.0
    %1628 = vmatpush1.msra.mxu0 0.0
    %1629 = vmatprep.subr.mxu0 0.0
    %1630 = vmatpush1.msra.mxu0 0.0
    %1631 = vmatprep.subr.mxu0 0.0
    %1632 = vmatpush1.msra.mxu0 0.0
    %1633 = vmatprep.subr.mxu0 0.0
    %1634 = vmatpush1.msra.mxu0 0.0
    %1635 = vmatprep.subr.mxu0 0.0
    %1636 = vmatpush1.msra.mxu0 0.0
    %1637 = vmatprep.subr.mxu0 0.0
    %1638 = vmatpush1.msra.mxu0 0.0
    %1639 = vmatprep.subr.mxu0 0.0
    %1640 = vmatpush1.msra.mxu0 0.0
    %1641 = vmatprep.subr.mxu0 0.0
    %1642 = vmatpush1.msra.mxu0 0.0
    %1643 = vmatprep.subr.mxu0 0.0
    %1644 = vmatpush1.msra.mxu0 0.0
    %1645 = vmatprep.subr.mxu0 0.0
    %1646 = vmatpush1.msra.mxu0 0.0
    %1647 = vmatprep.subr.mxu0 0.0
    %1648 = vmatpush1.msra.mxu0 0.0
    %1649 = vmatprep.subr.mxu0 0.0
    %1650 = vmatpush1.msra.mxu0 0.0
    %1651 = vmatprep.subr.mxu0 0.0
    %1652 = vmatpush1.msra.mxu0 0.0
    %1653 = vmatprep.subr.mxu0 0.0
    %1654 = vmatpush1.msra.mxu0 0.0
    %1655 = vmatprep.subr.mxu0 0.0
    %1656 = vmatpush1.msra.mxu0 0.0
    %1657 = vmatprep.subr.mxu0 0.0
    %1658 = vmatpush1.msra.mxu0 0.0
    %1659 = vmatprep.subr.mxu0 0.0
    %1660 = vmatpush1.msra.mxu0 0.0
    %1661 = vmatprep.subr.mxu0 0.0
    %1662 = vmatpush1.msra.mxu0 0.0
    %1663 = vmatprep.subr.mxu0 0.0
    %1664 = vmatpush1.msra.mxu0 0.0
    %1665 = vmatprep.subr.mxu0 0.0
    %1666 = vmatpush1.msra.mxu0 0.0
    %1667 = vmatprep.subr.mxu0 0.0
    %1668 = vmatpush1.msra.mxu0 0.0
    %1669 = vmatprep.subr.mxu0 0.0
    %1670 = vmatpush1.msra.mxu0 0.0
    %1671 = vmatprep.subr.mxu0 0.0
    %1672 = vmatpush1.msra.mxu0 0.0
    %1673 = vmatprep.subr.mxu0 0.0
    %1674 = vmatpush1.msra.mxu0 0.0
    %1675 = vmatprep.subr.mxu0 0.0
    %1676 = vmatpush1.msra.mxu0 0.0
    %1677 = vmatprep.subr.mxu0 0.0
    %1678 = vmatpush1.msra.mxu0 0.0
    %1679 = vmatprep.subr.mxu0 0.0
    %1680 = vmatpush1.msra.mxu0 0.0
    %1681 = vmatprep.mubr.f32.mxu0 0.0
    %1682 = vmatmul.mubr.f32.gmra.mrb[0].mxu0 %v1615
    %v1683 = vpop.f32.mrb[0].mxu0
    %v1684 = vadd.f32 0.0, %v1683
    %v1685 = vpop.f32.mrb[0].mxu0
    %1686 = vdwg.mxu0
    %v1687 = vadd.f32 %v1525, %v1684
    %v1688 = vadd.f32 %v153, %v1035
    %v1689 = vadd.f32 %v158, %v1687
    %v1690 = vld [vmem:[%s8] sm:$0xff]
    %v1691 = vld [vmem:[%s8 + $0x8] sm:$0xff]
    %v1692 = vld [vmem:[%s8 + $0x10] sm:$0xff]
    %v1693 = vld [vmem:[%s8 + $0x18] sm:$0xff]
    %v1694 = vld [vmem:[%s9] sm:$0x1]
    %v1696 = vlaneseq
    %v1697 = vshrl.u32 %v1696, 7
    %v1698 = vsub.s32 0, %v1697
    %v1699 = vrot.slane %v1694, %v1698
    %v1702 = vsel %vm369, %v1688, 0
    %v1705 = vsel %vm369, %v1689, 0
    %1707 = vmatprep.subr.mxu0 0.0
    %1708 = vmatpush1.msra.mxu0 %v1690
    %1709 = vmatprep.subr.mxu0 0.0
    %1710 = vmatpush1.msra.mxu0 %v1691
    %1711 = vmatprep.subr.mxu0 0.0
    %1712 = vmatpush1.msra.mxu0 %v1692
    %1713 = vmatprep.subr.mxu0 0.0
    %1714 = vmatpush1.msra.mxu0 %v1693
    %1715 = vmatprep.subr.mxu0 0.0
    %1716 = vmatpush1.msra.mxu0 0.0
    %1717 = vmatprep.subr.mxu0 0.0
    %1718 = vmatpush1.msra.mxu0 0.0
    %1719 = vmatprep.subr.mxu0 0.0
    %1720 = vmatpush1.msra.mxu0 0.0
    %1721 = vmatprep.subr.mxu0 0.0
    %1722 = vmatpush1.msra.mxu0 0.0
    %1723 = vmatprep.subr.mxu0 0.0
    %1724 = vmatpush1.msra.mxu0 0.0
    %1725 = vmatprep.subr.mxu0 0.0
    %1726 = vmatpush1.msra.mxu0 0.0
    %1727 = vmatprep.subr.mxu0 0.0
    %1728 = vmatpush1.msra.mxu0 0.0
    %1729 = vmatprep.subr.mxu0 0.0
    %1730 = vmatpush1.msra.mxu0 0.0
    %1731 = vmatprep.subr.mxu0 0.0
    %1732 = vmatpush1.msra.mxu0 0.0
    %1733 = vmatprep.subr.mxu0 0.0
    %1734 = vmatpush1.msra.mxu0 0.0
    %1735 = vmatprep.subr.mxu0 0.0
    %1736 = vmatpush1.msra.mxu0 0.0
    %1737 = vmatprep.subr.mxu0 0.0
    %1738 = vmatpush1.msra.mxu0 0.0
    %1739 = vmatprep.subr.mxu0 0.0
    %1740 = vmatpush1.msra.mxu0 0.0
    %1741 = vmatprep.subr.mxu0 0.0
    %1742 = vmatpush1.msra.mxu0 0.0
    %1743 = vmatprep.subr.mxu0 0.0
    %1744 = vmatpush1.msra.mxu0 0.0
    %1745 = vmatprep.subr.mxu0 0.0
    %1746 = vmatpush1.msra.mxu0 0.0
    %1747 = vmatprep.subr.mxu0 0.0
    %1748 = vmatpush1.msra.mxu0 0.0
    %1749 = vmatprep.subr.mxu0 0.0
    %1750 = vmatpush1.msra.mxu0 0.0
    %1751 = vmatprep.subr.mxu0 0.0
    %1752 = vmatpush1.msra.mxu0 0.0
    %1753 = vmatprep.subr.mxu0 0.0
    %1754 = vmatpush1.msra.mxu0 0.0
    %1755 = vmatprep.subr.mxu0 0.0
    %1756 = vmatpush1.msra.mxu0 0.0
    %1757 = vmatprep.subr.mxu0 0.0
    %1758 = vmatpush1.msra.mxu0 0.0
    %1759 = vmatprep.subr.mxu0 0.0
    %1760 = vmatpush1.msra.mxu0 0.0
    %1761 = vmatprep.subr.mxu0 0.0
    %1762 = vmatpush1.msra.mxu0 0.0
    %1763 = vmatprep.subr.mxu0 0.0
    %1764 = vmatpush1.msra.mxu0 0.0
    %1765 = vmatprep.subr.mxu0 0.0
    %1766 = vmatpush1.msra.mxu0 0.0
    %1767 = vmatprep.subr.mxu0 0.0
    %1768 = vmatpush1.msra.mxu0 0.0
    %1769 = vmatprep.subr.mxu0 0.0
    %1770 = vmatpush1.msra.mxu0 0.0
    %1771 = vmatprep.mubr.f32.mxu0 0.0
    %1772 = vmatmul.mubr.f32.gmra.mrb[0].mxu0 %v1702
    %v1773 = vpop.f32.mrb[0].mxu0
    %v1774 = vadd.f32 %v1699, %v1773
    %v1775 = vpop.f32.mrb[0].mxu0
    %1776 = vmatprep.mubr.f32.mxu0 0.0
    %1777 = vmatmul.mubr.f32.gmra.mrb[0].mxu0 %v1705
    %v1778 = vpop.f32.mrb[0].mxu0
    %v1779 = vadd.f32 %v1699, %v1778
    %v1780 = vpop.f32.mrb[0].mxu0
    %1781 = vdwg.mxu0
    %v1782 = vmax.f32 %v1774, 0.0
    %v1783 = vmax.f32 %v1779, 0.0
    %v1784 = vadd.f32 %v1688, %v1782
    %v1785 = vadd.f32 %v1689, %v1783
    %1786 = vst.msk [vmem:[#allocation7] sm:$0xff] %vm369, %v1784
    %1787 = vst.msk [vmem:[#allocation7 + $0x8] sm:$0xff] %vm369, %v1785
    // Predicated region
    $region50: #{tpu_custom_call.1} parent=1 // pred_check
      _
    $region51: #{tpu_custom_call.1} parent=1 // pred_check_branch
      %1789 = sbr.rel (0) target = $region53
    $region52: #{tpu_custom_call.1} parent=1 // pred_region
      %s1791 = ssub.s32 256, 256
      %1792 = vsyncadd [#allocation4], %s1791
      %s1793 = sshll.u32 [#allocation7], 4
      %s1794 = int_to_ptr.vmem [resolvable:$true] %s1793
      %1799 = dma.vmem_to_hbm [thread:$0]  %s1794, 256, %s10, [#allocation4], 128, 128, 8
    $region53: #{tpu_custom_call.1} parent=1 // pred_fallthru
      _
    // Predicated region
    $region54: #{tpu_custom_call.1} parent=1 // pred_check
      _
    $region55: #{tpu_custom_call.1} parent=1 // pred_check_branch
      %1801 = sbr.rel (0) target = $region57
    $region56: #{tpu_custom_call.1} parent=1 // pred_region
      %1802 = dma.done [#allocation4], 256
    $region57: #{tpu_custom_call.1} parent=1 // pred_fallthru
      _
    %1803 = vsyncpa [#allocation3], 1
    %1804 = vsyncpa [#allocation6], 1
    %1805 = vsyncpa [#allocation4], 1

</llo_original>
